<compile_context>
chip_gen: v7x
topology: tpu7x:2x2x1
jax: 0.10.0
libtpu: 0.0.40
codegen_flags: <defaults>
</compile_context>

<pallas_src>
import jax
import jax.numpy as jnp
from jax.experimental import pallas as pl
from jax.experimental.pallas import tpu as pltpu

# ----------------------------- model sizes (synthetic) -----------------------------
SRC_VOCAB = 20      # encoder.input_dim
TRG_VOCAB = 20      # decoder.output_dim
EMB = 16            # embedding dim (encoder & decoder)
HID = 32            # hid_dim
N_LAYERS = 1
BATCH = 2
SRC_LEN = 8
TRG_LEN = 8

BP = 8              # batch padded to a full sublane group
VPAD = 128          # vocab padded to a full lane group (lane-dense logits stores / MXU tile)


# ----------------------------- encoder LSTM kernel ---------------------------------
def encoder_kernel(x_ref, w_ref, b_ref, enc_ref, c_out_ref, h_s, c_s):
    """One LSTM time step per grid iteration; h/c are resident VMEM scratch."""
    t = pl.program_id(0)

    @pl.when(t == 0)
    def _():
        h_s[...] = jnp.zeros_like(h_s)
        c_s[...] = jnp.zeros_like(c_s)

    x = x_ref[0]                       # (BP, E)
    h = h_s[...]                       # (BP, H)
    c = c_s[...]                       # (BP, H)

    # packed [x ; h] @ (E+H, 4H) -> single MXU pass
    zin = jnp.concatenate([x, h], axis=-1)                                   # (BP, E+H)
    gates = jnp.dot(zin, w_ref[...], preferred_element_type=jnp.float32) + b_ref[...]

    H = h.shape[-1]
    i = jax.nn.sigmoid(gates[:, 0 * H:1 * H])
    f = jax.nn.sigmoid(gates[:, 1 * H:2 * H])
    g = jnp.tanh(gates[:, 2 * H:3 * H])
    o = jax.nn.sigmoid(gates[:, 3 * H:4 * H])

    c_new = f * c + i * g
    h_new = o * jnp.tanh(c_new)

    h_s[...] = h_new
    c_s[...] = c_new
    enc_ref[0] = h_new                 # (S, BP, H) output, one row per step
    c_out_ref[...] = c_new             # resident; final value written back once at the end


def encoder_forward(src_emb, W, b):
    S, Bp, E = src_emb.shape
    H = W.shape[1] // 4
    enc_outs, c_last = pl.pallas_call(
        encoder_kernel,
        grid=(S,),
        in_specs=[
            pl.BlockSpec((1, Bp, E), lambda t: (t, 0, 0)),
            pl.BlockSpec((E + H, 4 * H), lambda t: (0, 0)),
            pl.BlockSpec((1, 4 * H), lambda t: (0, 0)),
        ],
        out_specs=[
            pl.BlockSpec((1, Bp, H), lambda t: (t, 0, 0)),
            pl.BlockSpec((Bp, H), lambda t: (0, 0)),
        ],
        out_shape=[
            jax.ShapeDtypeStruct((S, Bp, H), jnp.float32),
            jax.ShapeDtypeStruct((Bp, H), jnp.float32),
        ],
        scratch_shapes=[pltpu.VMEM((Bp, H), jnp.float32),
                        pltpu.VMEM((Bp, H), jnp.float32)],
        compiler_params=pltpu.CompilerParams(dimension_semantics=("arbitrary",)),
    )(src_emb, W, b)
    return enc_outs, c_last


# ----------------------------- fused decoder kernel --------------------------------
def decoder_kernel(tf_ref,                                   # SMEM scalar-prefetch: (T,) int32
                   trg_emb_ref, h0_ref, c0_ref, enc_ref, emb_tbl_ref,
                   wg_ref, bg_ref, wo_ref, bo_ref,
                   out_ref, h_s, c_s, emb_s):
    g = pl.program_id(0)
    n = pl.num_programs(0)

    @pl.when(g == 0)
    def _():
        h_s[...] = h0_ref[...]
        c_s[...] = c0_ref[...]
        emb_s[...] = trg_emb_ref[0]                           # input at t=1 is trg[0]

    @pl.when(g > 0)
    def _():
        # teacher forcing decision drawn at python-loop iteration g picks the input for step g+1
        w = (tf_ref[g] > 0).astype(jnp.float32)
        emb_s[...] = w * trg_emb_ref[0] + (1.0 - w) * emb_s[...]

    emb = emb_s[...]                   # (BP, E)
    h = h_s[...]                       # (BP, H)
    c = c_s[...]                       # (BP, H)
    enc = enc_ref[...]                 # (BP, S, H), resident across the whole grid

    # ---- dot-product attention over encoder outputs (MXU batched contractions) ----
    hq = h[:, None, :]                                                        # (BP, 1, H)
    s3 = jnp.einsum('bqh,bsh->bqs', hq, enc,
                    preferred_element_type=jnp.float32)                       # (BP, 1, S)
    s3 = s3 - jnp.max(s3, axis=-1, keepdims=True)
    e3 = jnp.exp(s3)
    a3 = e3 * pl.reciprocal(jnp.sum(e3, axis=-1, keepdims=True), approx=True)
    ctx = jnp.einsum('bqs,bsh->bqh', a3, enc,
                     preferred_element_type=jnp.float32)[:, 0, :]             # (BP, H)

    # ---- LSTM step: packed [emb ; ctx ; h] @ (E+2H, 4H) single MXU tile ----
    zin = jnp.concatenate([emb, ctx, h], axis=-1)                             # (BP, 80)
    gates = jnp.dot(zin, wg_ref[...], preferred_element_type=jnp.float32) + bg_ref[...]

    H = h.shape[-1]
    i = jax.nn.sigmoid(gates[:, 0 * H:1 * H])
    f = jax.nn.sigmoid(gates[:, 1 * H:2 * H])
    gg = jnp.tanh(gates[:, 2 * H:3 * H])
    o = jax.nn.sigmoid(gates[:, 3 * H:4 * H])

    c_new = f * c + i * gg
    h_new = o * jnp.tanh(c_new)

    # ---- output projection: packed [h_new ; ctx ; emb] @ (E+2H, VPAD) ----
    zout = jnp.concatenate([h_new, ctx, emb], axis=-1)                        # (BP, 80)
    logits = jnp.dot(zout, wo_ref[...], preferred_element_type=jnp.float32) + bo_ref[...]

    out_ref[0] = logits                # lane-dense (BP, 128) store
    h_s[...] = h_new
    c_s[...] = c_new

    # ---- greedy top-1 + in-kernel embedding lookup for the next step ----
    @pl.when(g + 1 < n)
    def _():
        col = jax.lax.broadcasted_iota(jnp.int32, logits.shape, 1)            # (BP, VPAD)
        masked = jnp.where(col < TRG_VOCAB, logits, jnp.float32(-1e30))
        m = jnp.max(masked, axis=-1, keepdims=True)
        top1 = jnp.min(jnp.where(masked == m, col, jnp.int32(VPAD)),
                       axis=-1, keepdims=True)                                # first argmax idx
        onehot = (col == top1).astype(jnp.float32)                            # (BP, VPAD)
        emb_s[...] = jnp.dot(onehot, emb_tbl_ref[...],
                             preferred_element_type=jnp.float32)              # (BP, E)


def decoder_forward(tf_mask, trg_emb, h0, c0, enc_b, emb_tbl, Wg, bg, Wo, bo):
    T, Bp, E = trg_emb.shape
    S = enc_b.shape[1]
    H = h0.shape[-1]
    Tm1 = T - 1
    grid_spec = pltpu.PrefetchScalarGridSpec(
        num_scalar_prefetch=1,
        grid=(Tm1,),
        in_specs=[
            pl.BlockSpec((1, Bp, E), lambda g, tf: (g, 0, 0)),        # trg embeddings (streamed)
            pl.BlockSpec((Bp, H), lambda g, tf: (0, 0)),              # h0 (resident)
            pl.BlockSpec((Bp, H), lambda g, tf: (0, 0)),              # c0 (resident)
            pl.BlockSpec((Bp, S, H), lambda g, tf: (0, 0, 0)),        # encoder outputs (resident)
            pl.BlockSpec((VPAD, E), lambda g, tf: (0, 0)),            # padded embedding table
            pl.BlockSpec((E + 2 * H, 4 * H), lambda g, tf: (0, 0)),   # packed gate weight
            pl.BlockSpec((1, 4 * H), lambda g, tf: (0, 0)),
            pl.BlockSpec((E + 2 * H, VPAD), lambda g, tf: (0, 0)),    # packed output weight
            pl.BlockSpec((1, VPAD), lambda g, tf: (0, 0)),
        ],
        out_specs=pl.BlockSpec((1, Bp, VPAD), lambda g, tf: (g, 0, 0)),
        scratch_shapes=[
            pltpu.VMEM((Bp, H), jnp.float32),      # h
            pltpu.VMEM((Bp, H), jnp.float32),      # c
            pltpu.VMEM((Bp, E), jnp.float32),      # next-step input embedding
        ],
    )
    return pl.pallas_call(
        decoder_kernel,
        grid_spec=grid_spec,
        out_shape=jax.ShapeDtypeStruct((Tm1, Bp, VPAD), jnp.float32),
        compiler_params=pltpu.CompilerParams(dimension_semantics=("arbitrary",)),
    )(tf_mask, trg_emb, h0, c0, enc_b, emb_tbl, Wg, bg, Wo, bo)


# ----------------------------- parameter init (deterministic) -----------------------
def init_params(key):
    ks = jax.random.split(key, 10)
    s = 0.1
    dec_emb = s * jax.random.normal(ks[3], (TRG_VOCAB, EMB), jnp.float32)
    dec_Wo_real = s * jax.random.normal(ks[7], (EMB + 2 * HID, TRG_VOCAB), jnp.float32)
    return {
        # encoder: packed [W_ih ; W_hh] -> (E+H, 4H)
        "enc_emb": s * jax.random.normal(ks[0], (SRC_VOCAB, EMB), jnp.float32),
        "enc_W":   s * jax.random.normal(ks[1], (EMB + HID, 4 * HID), jnp.float32),
        "enc_b":   jnp.zeros((1, 4 * HID), jnp.float32),
        # decoder: packed [W_ie ; W_ic ; W_hh] -> (E+2H, 4H), [W_oh ; W_oc ; W_oe] -> (E+2H, V)
        "dec_emb":     dec_emb,
        "dec_emb_pad": jnp.zeros((VPAD, EMB), jnp.float32).at[:TRG_VOCAB].set(dec_emb),
        "dec_Wg":  s * jax.random.normal(ks[4], (EMB + 2 * HID, 4 * HID), jnp.float32),
        "dec_bg":  jnp.zeros((1, 4 * HID), jnp.float32),
        "dec_Wo":  jnp.zeros((EMB + 2 * HID, VPAD), jnp.float32).at[:, :TRG_VOCAB].set(dec_Wo_real),
        "dec_bo":  jnp.zeros((1, VPAD), jnp.float32),
    }


# ----------------------------- Seq2Seq forward --------------------------------------
@jax.jit
def seq2seq_forward(src, trg, params, tf_key, teacher_forcing_ratio=0.5):
    """Mirrors Seq2Seq.forward: outputs[0] stays all-ones; rows 1..T-1 are decoder logits."""
    S, B = src.shape
    T, _ = trg.shape
    V = TRG_VOCAB

    # pad batch to BP sublanes (padding rows use token 0); real rows sliced off at the end
    src_p = jnp.zeros((S, BP), jnp.int32).at[:, :B].set(src)
    trg_p = jnp.zeros((T, BP), jnp.int32).at[:, :B].set(trg)

    # encoder (fused over time)
    src_emb = params["enc_emb"][src_p]                           # (S, BP, E)
    enc_outs, c0 = encoder_forward(src_emb, params["enc_W"], params["enc_b"])
    h0 = enc_outs[S - 1]                                         # (BP, H) final hidden state
    enc_b = jnp.transpose(enc_outs, (1, 0, 2))                   # (BP, S, H) for attention

    # deterministic replacement for python `random.random() < teacher_forcing_ratio`
    tf_mask = (jax.random.uniform(tf_key, (T,)) < teacher_forcing_ratio).astype(jnp.int32)

    # decoder input embeddings for the teacher-forced path (index g == token trg[g])
    trg_emb = params["dec_emb"][trg_p]                           # (T, BP, E)

    logits_pad = decoder_forward(tf_mask, trg_emb, h0, c0, enc_b,
                                 params["dec_emb_pad"],
                                 params["dec_Wg"], params["dec_bg"],
                                 params["dec_Wo"], params["dec_bo"])   # (T-1, BP, VPAD)

    logits = logits_pad[:, :B, :V]                               # strip batch/vocab padding
    outputs = jnp.concatenate([jnp.ones((1, B, V), jnp.float32), logits], axis=0)
    return outputs                                               # (T, B, V)

# TODO(synk): sample() (multinomial sampling) and batch_pgloss() (autograd policy loss) use
#             host-side RNG / training machinery; only the forward() hot path is implemented.


# ----------------------------- main --------------------------------------------------
if __name__ == "__main__":
    key = jax.random.PRNGKey(0)
    k_param, k_src, k_trg, k_tf = jax.random.split(key, 4)

    params = init_params(k_param)
    src = jax.random.randint(k_src, (SRC_LEN, BATCH), 0, SRC_VOCAB, dtype=jnp.int32)
    trg = jax.random.randint(k_trg, (TRG_LEN, BATCH), 0, TRG_VOCAB, dtype=jnp.int32)

    out = seq2seq_forward(src, trg, params, k_tf, 0.5)
    out = jax.block_until_ready(out)

    assert out.shape == (TRG_LEN, BATCH, TRG_VOCAB), out.shape
    assert bool(jnp.all(out[0] == 1.0))          # row 0 untouched, like torch.ones init
    assert bool(jnp.all(jnp.isfinite(out)))
    print("KERNEL_OK")
</pallas_src>

<mosaic_0001>
module attributes {stable_mosaic.version = 11 : i64} {
  func.func @encoder_kernel(%arg0: i32, %arg1: memref<1x8x16xf32, #tpu.memory_space<vmem>>, %arg2: memref<48x128xf32, #tpu.memory_space<vmem>>, %arg3: memref<1x128xf32, #tpu.memory_space<vmem>>, %arg4: memref<1x8x32xf32, #tpu.memory_space<vmem>>, %arg5: memref<8x32xf32, #tpu.memory_space<vmem>>, %arg6: memref<8x32xf32, #tpu.memory_space<vmem>>, %arg7: memref<8x32xf32, #tpu.memory_space<vmem>>) attributes {dimension_semantics = [#tpu.dimension_semantics<arbitrary>], iteration_bounds = array<i64: 8>, scalar_prefetch = 0 : i64, scratch_operands = 2 : i64, tpu.core_type = #tpu.core_type<tc>, window_params = [{transform_indices = @transform_0, window_bounds = array<i64: 1, 8, 16>}, {pipeline_mode = #tpu.pipeline_mode<synchronous>, transform_indices = @transform_1, window_bounds = array<i64: 48, 128>}, {pipeline_mode = #tpu.pipeline_mode<synchronous>, transform_indices = @transform_2, window_bounds = array<i64: 1, 128>}, {transform_indices = @transform_3, window_bounds = array<i64: 1, 8, 32>}, {pipeline_mode = #tpu.pipeline_mode<synchronous>, transform_indices = @transform_4, window_bounds = array<i64: 8, 32>}]} {
    %c0_i32 = arith.constant 0 : i32
    %0 = arith.cmpi eq, %arg0, %c0_i32 : i32
    %1 = arith.extui %0 : i1 to i32
    %c0_i32_0 = arith.constant 0 : i32
    %2 = arith.cmpi ne, %1, %c0_i32_0 : i32
    scf.if %2 {
      %cst_23 = arith.constant 0.000000e+00 : f32
      %44 = vector.broadcast %cst_23 : f32 to vector<8x32xf32>
      %c0_24 = arith.constant 0 : index
      %c0_25 = arith.constant 0 : index
      %45 = vector.load %arg6[%c0_24, %c0_25] : memref<8x32xf32, #tpu.memory_space<vmem>>, vector<8x32xf32>
      tpu.vector_store %arg6[%c0_24, %c0_25], %44 {strides = array<i32>} : memref<8x32xf32, #tpu.memory_space<vmem>>, vector<8x32xf32>,
      %cst_26 = arith.constant 0.000000e+00 : f32
      %46 = vector.broadcast %cst_26 : f32 to vector<8x32xf32>
      %c0_27 = arith.constant 0 : index
      %c0_28 = arith.constant 0 : index
      %47 = vector.load %arg7[%c0_27, %c0_28] : memref<8x32xf32, #tpu.memory_space<vmem>>, vector<8x32xf32>
      tpu.vector_store %arg7[%c0_27, %c0_28], %46 {strides = array<i32>} : memref<8x32xf32, #tpu.memory_space<vmem>>, vector<8x32xf32>,
    } else {
    }
    %c0 = arith.constant 0 : index
    %c0_1 = arith.constant 0 : index
    %c0_2 = arith.constant 0 : index
    %3 = vector.load %arg1[%c0, %c0_1, %c0_2] : memref<1x8x16xf32, #tpu.memory_space<vmem>>, vector<1x8x16xf32>
    %4 = vector.shape_cast %3 : vector<1x8x16xf32> to vector<8x16xf32>
    %c0_3 = arith.constant 0 : index
    %c0_4 = arith.constant 0 : index
    %5 = vector.load %arg6[%c0_3, %c0_4] : memref<8x32xf32, #tpu.memory_space<vmem>>, vector<8x32xf32>
    %c0_5 = arith.constant 0 : index
    %c0_6 = arith.constant 0 : index
    %6 = vector.load %arg7[%c0_5, %c0_6] : memref<8x32xf32, #tpu.memory_space<vmem>>, vector<8x32xf32>
    %7 = tpu.concatenate %4, %5 in 1 : vector<8x16xf32>, vector<8x32xf32> -> vector<8x48xf32>
    %c0_7 = arith.constant 0 : index
    %c0_8 = arith.constant 0 : index
    %8 = vector.load %arg2[%c0_7, %c0_8] : memref<48x128xf32, #tpu.memory_space<vmem>>, vector<48x128xf32>
    %cst = arith.constant dense<0.000000e+00> : vector<8x128xf32>
    %9 = tpu.matmul %7, %8, %cst {dimension_numbers = #tpu.dot_dimension_numbers<[1], [0], [0], [1], [0, 0, 1, 1], [], []>} : vector<8x48xf32>, vector<48x128xf32>, vector<8x128xf32> -> vector<8x128xf32>
    %c0_9 = arith.constant 0 : index
    %c0_10 = arith.constant 0 : index
    %10 = vector.load %arg3[%c0_9, %c0_10] : memref<1x128xf32, #tpu.memory_space<vmem>>, vector<1x128xf32>
    %11 = vector.broadcast %10 : vector<1x128xf32> to vector<8x128xf32>
    %12 = arith.addf %9, %11 : vector<8x128xf32>
    %13 = vector.extract_strided_slice %12 {offsets = [0, 0], sizes = [8, 32], strides = [1, 1]} : vector<8x128xf32> to vector<8x32xf32>
    %14 = arith.negf %13 : vector<8x32xf32>
    %15 = math.exp %14 : vector<8x32xf32>
    %cst_11 = arith.constant 1.000000e+00 : f32
    %16 = vector.broadcast %cst_11 : f32 to vector<8x32xf32>
    %17 = arith.addf %16, %15 : vector<8x32xf32>
    %18 = arith.divf %16, %17 : vector<8x32xf32>
    %19 = vector.extract_strided_slice %12 {offsets = [0, 32], sizes = [8, 32], strides = [1, 1]} : vector<8x128xf32> to vector<8x32xf32>
    %20 = arith.negf %19 : vector<8x32xf32>
    %21 = math.exp %20 : vector<8x32xf32>
    %cst_12 = arith.constant 1.000000e+00 : f32
    %22 = vector.broadcast %cst_12 : f32 to vector<8x32xf32>
    %23 = arith.addf %22, %21 : vector<8x32xf32>
    %24 = arith.divf %22, %23 : vector<8x32xf32>
    %25 = vector.extract_strided_slice %12 {offsets = [0, 64], sizes = [8, 32], strides = [1, 1]} : vector<8x128xf32> to vector<8x32xf32>
    %26 = math.tanh %25 : vector<8x32xf32>
    %27 = vector.extract_strided_slice %12 {offsets = [0, 96], sizes = [8, 32], strides = [1, 1]} : vector<8x128xf32> to vector<8x32xf32>
    %28 = arith.negf %27 : vector<8x32xf32>
    %29 = math.exp %28 : vector<8x32xf32>
    %cst_13 = arith.constant 1.000000e+00 : f32
    %30 = vector.broadcast %cst_13 : f32 to vector<8x32xf32>
    %31 = arith.addf %30, %29 : vector<8x32xf32>
    %32 = arith.divf %30, %31 : vector<8x32xf32>
    %33 = arith.mulf %24, %6 : vector<8x32xf32>
    %34 = arith.mulf %18, %26 : vector<8x32xf32>
    %35 = arith.addf %33, %34 : vector<8x32xf32>
    %36 = math.tanh %35 : vector<8x32xf32>
    %37 = arith.mulf %32, %36 : vector<8x32xf32>
    %c0_14 = arith.constant 0 : index
    %c0_15 = arith.constant 0 : index
    %38 = vector.load %arg6[%c0_14, %c0_15] : memref<8x32xf32, #tpu.memory_space<vmem>>, vector<8x32xf32>
    tpu.vector_store %arg6[%c0_14, %c0_15], %37 {strides = array<i32>} : memref<8x32xf32, #tpu.memory_space<vmem>>, vector<8x32xf32>,
    %c0_16 = arith.constant 0 : index
    %c0_17 = arith.constant 0 : index
    %39 = vector.load %arg7[%c0_16, %c0_17] : memref<8x32xf32, #tpu.memory_space<vmem>>, vector<8x32xf32>
    tpu.vector_store %arg7[%c0_16, %c0_17], %35 {strides = array<i32>} : memref<8x32xf32, #tpu.memory_space<vmem>>, vector<8x32xf32>,
    %c0_18 = arith.constant 0 : index
    %c0_19 = arith.constant 0 : index
    %c0_20 = arith.constant 0 : index
    %40 = vector.load %arg4[%c0_18, %c0_19, %c0_20] : memref<1x8x32xf32, #tpu.memory_space<vmem>>, vector<1x8x32xf32>
    %41 = vector.shape_cast %40 : vector<1x8x32xf32> to vector<8x32xf32>
    %42 = vector.shape_cast %37 : vector<8x32xf32> to vector<1x8x32xf32>
    tpu.vector_store %arg4[%c0_18, %c0_19, %c0_20], %42 {strides = array<i32>} : memref<1x8x32xf32, #tpu.memory_space<vmem>>, vector<1x8x32xf32>,
    %c0_21 = arith.constant 0 : index
    %c0_22 = arith.constant 0 : index
    %43 = vector.load %arg5[%c0_21, %c0_22] : memref<8x32xf32, #tpu.memory_space<vmem>>, vector<8x32xf32>
    tpu.vector_store %arg5[%c0_21, %c0_22], %35 {strides = array<i32>} : memref<8x32xf32, #tpu.memory_space<vmem>>, vector<8x32xf32>,
    return
  }
  func.func @transform_0(%arg0: i32) -> (i32, i32, i32) {
    %c0_i32 = arith.constant 0 : i32
    %c0_i32_0 = arith.constant 0 : i32
    %c0_i32_1 = arith.constant 0 : i32
    return %arg0, %c0_i32, %c0_i32_0 : i32, i32, i32
  }
  func.func @transform_1(%arg0: i32) -> (i32, i32) {
    %c0_i32 = arith.constant 0 : i32
    %c0_i32_0 = arith.constant 0 : i32
    %c0_i32_1 = arith.constant 0 : i32
    return %c0_i32, %c0_i32_0 : i32, i32
  }
  func.func @transform_2(%arg0: i32) -> (i32, i32) {
    %c0_i32 = arith.constant 0 : i32
    %c0_i32_0 = arith.constant 0 : i32
    %c0_i32_1 = arith.constant 0 : i32
    return %c0_i32, %c0_i32_0 : i32, i32
  }
  func.func @transform_3(%arg0: i32) -> (i32, i32, i32) {
    %c0_i32 = arith.constant 0 : i32
    %c0_i32_0 = arith.constant 0 : i32
    %c0_i32_1 = arith.constant 0 : i32
    return %arg0, %c0_i32, %c0_i32_0 : i32, i32, i32
  }
  func.func @transform_4(%arg0: i32) -> (i32, i32) {
    %c0_i32 = arith.constant 0 : i32
    %c0_i32_0 = arith.constant 0 : i32
    %c0_i32_1 = arith.constant 0 : i32
    return %c0_i32, %c0_i32_0 : i32, i32
  }
}

module attributes {stable_mosaic.version = 11 : i64} {
  func.func @decoder_kernel(%arg0: i32, %arg1: memref<8xi32, #tpu.memory_space<smem>>, %arg2: memref<1x8x16xf32, #tpu.memory_space<vmem>>, %arg3: memref<8x32xf32, #tpu.memory_space<vmem>>, %arg4: memref<8x32xf32, #tpu.memory_space<vmem>>, %arg5: memref<8x8x32xf32, #tpu.memory_space<vmem>>, %arg6: memref<128x16xf32, #tpu.memory_space<vmem>>, %arg7: memref<80x128xf32, #tpu.memory_space<vmem>>, %arg8: memref<1x128xf32, #tpu.memory_space<vmem>>, %arg9: memref<80x128xf32, #tpu.memory_space<vmem>>, %arg10: memref<1x128xf32, #tpu.memory_space<vmem>>, %arg11: memref<1x8x128xf32, #tpu.memory_space<vmem>>, %arg12: memref<8x32xf32, #tpu.memory_space<vmem>>, %arg13: memref<8x32xf32, #tpu.memory_space<vmem>>, %arg14: memref<8x16xf32, #tpu.memory_space<vmem>>) attributes {dimension_semantics = [#tpu.dimension_semantics<arbitrary>], iteration_bounds = array<i64: 7>, scalar_prefetch = 1 : i64, scratch_operands = 3 : i64, tpu.core_type = #tpu.core_type<tc>, window_params = [{transform_indices = @transform_0, window_bounds = array<i64: 1, 8, 16>}, {pipeline_mode = #tpu.pipeline_mode<synchronous>, transform_indices = @transform_1, window_bounds = array<i64: 8, 32>}, {pipeline_mode = #tpu.pipeline_mode<synchronous>, transform_indices = @transform_2, window_bounds = array<i64: 8, 32>}, {pipeline_mode = #tpu.pipeline_mode<synchronous>, transform_indices = @transform_3, window_bounds = array<i64: 8, 8, 32>}, {pipeline_mode = #tpu.pipeline_mode<synchronous>, transform_indices = @transform_4, window_bounds = array<i64: 128, 16>}, {pipeline_mode = #tpu.pipeline_mode<synchronous>, transform_indices = @transform_5, window_bounds = array<i64: 80, 128>}, {pipeline_mode = #tpu.pipeline_mode<synchronous>, transform_indices = @transform_6, window_bounds = array<i64: 1, 128>}, {pipeline_mode = #tpu.pipeline_mode<synchronous>, transform_indices = @transform_7, window_bounds = array<i64: 80, 128>}, {pipeline_mode = #tpu.pipeline_mode<synchronous>, transform_indices = @transform_8, window_bounds = array<i64: 1, 128>}, {transform_indices = @transform_9, window_bounds = array<i64: 1, 8, 128>}]} {
    %c0_i32 = arith.constant 0 : i32
    %0 = arith.cmpi eq, %arg0, %c0_i32 : i32
    %1 = arith.extui %0 : i1 to i32
    %c0_i32_0 = arith.constant 0 : i32
    %2 = arith.cmpi ne, %1, %c0_i32_0 : i32
    scf.if %2 {
      %c0_35 = arith.constant 0 : index
      %c0_36 = arith.constant 0 : index
      %70 = vector.load %arg3[%c0_35, %c0_36] : memref<8x32xf32, #tpu.memory_space<vmem>>, vector<8x32xf32>
      %c0_37 = arith.constant 0 : index
      %c0_38 = arith.constant 0 : index
      %71 = vector.load %arg12[%c0_37, %c0_38] : memref<8x32xf32, #tpu.memory_space<vmem>>, vector<8x32xf32>
      tpu.vector_store %arg12[%c0_37, %c0_38], %70 {strides = array<i32>} : memref<8x32xf32, #tpu.memory_space<vmem>>, vector<8x32xf32>,
      %c0_39 = arith.constant 0 : index
      %c0_40 = arith.constant 0 : index
      %72 = vector.load %arg4[%c0_39, %c0_40] : memref<8x32xf32, #tpu.memory_space<vmem>>, vector<8x32xf32>
      %c0_41 = arith.constant 0 : index
      %c0_42 = arith.constant 0 : index
      %73 = vector.load %arg13[%c0_41, %c0_42] : memref<8x32xf32, #tpu.memory_space<vmem>>, vector<8x32xf32>
      tpu.vector_store %arg13[%c0_41, %c0_42], %72 {strides = array<i32>} : memref<8x32xf32, #tpu.memory_space<vmem>>, vector<8x32xf32>,
      %c0_43 = arith.constant 0 : index
      %c0_44 = arith.constant 0 : index
      %c0_45 = arith.constant 0 : index
      %74 = vector.load %arg2[%c0_43, %c0_44, %c0_45] : memref<1x8x16xf32, #tpu.memory_space<vmem>>, vector<1x8x16xf32>
      %75 = vector.shape_cast %74 : vector<1x8x16xf32> to vector<8x16xf32>
      %c0_46 = arith.constant 0 : index
      %c0_47 = arith.constant 0 : index
      %76 = vector.load %arg14[%c0_46, %c0_47] : memref<8x16xf32, #tpu.memory_space<vmem>>, vector<8x16xf32>
      tpu.vector_store %arg14[%c0_46, %c0_47], %75 {strides = array<i32>} : memref<8x16xf32, #tpu.memory_space<vmem>>, vector<8x16xf32>,
    } else {
    }
    %c0_i32_1 = arith.constant 0 : i32
    %3 = arith.cmpi sgt, %arg0, %c0_i32_1 : i32
    %4 = arith.extui %3 : i1 to i32
    %c0_i32_2 = arith.constant 0 : i32
    %5 = arith.cmpi ne, %4, %c0_i32_2 : i32
    scf.if %5 {
      %70 = arith.index_cast %arg0 : i32 to index
      %71 = memref.load %arg1[%70] : memref<8xi32, #tpu.memory_space<smem>>
      %c0_i32_35 = arith.constant 0 : i32
      %72 = arith.cmpi sgt, %71, %c0_i32_35 : i32
      %73 = arith.extui %72 : i1 to i32
      %74 = arith.sitofp %73 : i32 to f32
      %c0_36 = arith.constant 0 : index
      %c0_37 = arith.constant 0 : index
      %c0_38 = arith.constant 0 : index
      %75 = vector.load %arg2[%c0_36, %c0_37, %c0_38] : memref<1x8x16xf32, #tpu.memory_space<vmem>>, vector<1x8x16xf32>
      %76 = vector.shape_cast %75 : vector<1x8x16xf32> to vector<8x16xf32>
      %77 = vector.broadcast %74 : f32 to vector<8x16xf32>
      %78 = arith.mulf %77, %76 : vector<8x16xf32>
      %cst_39 = arith.constant 1.000000e+00 : f32
      %79 = arith.subf %cst_39, %74 : f32
      %c0_40 = arith.constant 0 : index
      %c0_41 = arith.constant 0 : index
      %80 = vector.load %arg14[%c0_40, %c0_41] : memref<8x16xf32, #tpu.memory_space<vmem>>, vector<8x16xf32>
      %81 = vector.broadcast %79 : f32 to vector<8x16xf32>
      %82 = arith.mulf %81, %80 : vector<8x16xf32>
      %83 = arith.addf %78, %82 : vector<8x16xf32>
      %c0_42 = arith.constant 0 : index
      %c0_43 = arith.constant 0 : index
      %84 = vector.load %arg14[%c0_42, %c0_43] : memref<8x16xf32, #tpu.memory_space<vmem>>, vector<8x16xf32>
      tpu.vector_store %arg14[%c0_42, %c0_43], %83 {strides = array<i32>} : memref<8x16xf32, #tpu.memory_space<vmem>>, vector<8x16xf32>,
    } else {
    }
    %c0 = arith.constant 0 : index
    %c0_3 = arith.constant 0 : index
    %6 = vector.load %arg14[%c0, %c0_3] : memref<8x16xf32, #tpu.memory_space<vmem>>, vector<8x16xf32>
    %c0_4 = arith.constant 0 : index
    %c0_5 = arith.constant 0 : index
    %7 = vector.load %arg12[%c0_4, %c0_5] : memref<8x32xf32, #tpu.memory_space<vmem>>, vector<8x32xf32>
    %c0_6 = arith.constant 0 : index
    %c0_7 = arith.constant 0 : index
    %8 = vector.load %arg13[%c0_6, %c0_7] : memref<8x32xf32, #tpu.memory_space<vmem>>, vector<8x32xf32>
    %c0_8 = arith.constant 0 : index
    %c0_9 = arith.constant 0 : index
    %c0_10 = arith.constant 0 : index
    %9 = vector.load %arg5[%c0_8, %c0_9, %c0_10] : memref<8x8x32xf32, #tpu.memory_space<vmem>>, vector<8x8x32xf32>
    %10 = vector.shape_cast %7 : vector<8x32xf32> to vector<8x1x32xf32>
    "tpu.trace_start"() <{level = 10 : i32, message = "bqh,bsh->bqs"}> : () -> ()
    %cst = arith.constant dense<0.000000e+00> : vector<8x1x8xf32>
    %11 = tpu.matmul %10, %9, %cst {dimension_numbers = #tpu.dot_dimension_numbers<[2], [2], [1], [1], [0, 0, 0, 1, 1, 1], [0], [0]>} : vector<8x1x32xf32>, vector<8x8x32xf32>, vector<8x1x8xf32> -> vector<8x1x8xf32>
    "tpu.trace_stop"() : () -> ()
    %cst_11 = arith.constant dense<0xFF800000> : vector<8x1xf32>
    %12 = vector.multi_reduction <maximumf>, %11, %cst_11 [2] : vector<8x1x8xf32> to vector<8x1xf32>
    %13 = vector.shape_cast %12 : vector<8x1xf32> to vector<8x1x1xf32>
    %14 = vector.broadcast %13 : vector<8x1x1xf32> to vector<8x1x8xf32>
    %15 = arith.subf %11, %14 : vector<8x1x8xf32>
    %16 = math.exp %15 : vector<8x1x8xf32>
    %cst_12 = arith.constant dense<0.000000e+00> : vector<8x1xf32>
    %17 = vector.multi_reduction <add>, %16, %cst_12 [2] : vector<8x1x8xf32> to vector<8x1xf32>
    %18 = vector.shape_cast %17 : vector<8x1xf32> to vector<8x1x1xf32>
    %19 = tpu.reciprocal %18 {approx = true} : vector<8x1x1xf32> -> vector<8x1x1xf32>
    %20 = vector.broadcast %19 : vector<8x1x1xf32> to vector<8x1x8xf32>
    %21 = arith.mulf %16, %20 : vector<8x1x8xf32>
    "tpu.trace_start"() <{level = 10 : i32, message = "bqs,bsh->bqh"}> : () -> ()
    %cst_13 = arith.constant dense<0.000000e+00> : vector<8x1x32xf32>
    %22 = tpu.matmul %21, %9, %cst_13 {dimension_numbers = #tpu.dot_dimension_numbers<[2], [1], [1], [2], [0, 0, 0, 1, 1, 2], [0], [0]>} : vector<8x1x8xf32>, vector<8x8x32xf32>, vector<8x1x32xf32> -> vector<8x1x32xf32>
    "tpu.trace_stop"() : () -> ()
    %23 = vector.shape_cast %22 : vector<8x1x32xf32> to vector<8x32xf32>
    %24 = tpu.concatenate %6, %23, %7 in 1 : vector<8x16xf32>, vector<8x32xf32>, vector<8x32xf32> -> vector<8x80xf32>
    %c0_14 = arith.constant 0 : index
    %c0_15 = arith.constant 0 : index
    %25 = vector.load %arg7[%c0_14, %c0_15] : memref<80x128xf32, #tpu.memory_space<vmem>>, vector<80x128xf32>
    %cst_16 = arith.constant dense<0.000000e+00> : vector<8x128xf32>
    %26 = tpu.matmul %24, %25, %cst_16 {dimension_numbers = #tpu.dot_dimension_numbers<[1], [0], [0], [1], [0, 0, 1, 1], [], []>} : vector<8x80xf32>, vector<80x128xf32>, vector<8x128xf32> -> vector<8x128xf32>
    %c0_17 = arith.constant 0 : index
    %c0_18 = arith.constant 0 : index
    %27 = vector.load %arg8[%c0_17, %c0_18] : memref<1x128xf32, #tpu.memory_space<vmem>>, vector<1x128xf32>
    %28 = vector.broadcast %27 : vector<1x128xf32> to vector<8x128xf32>
    %29 = arith.addf %26, %28 : vector<8x128xf32>
    %30 = vector.extract_strided_slice %29 {offsets = [0, 0], sizes = [8, 32], strides = [1, 1]} : vector<8x128xf32> to vector<8x32xf32>
    %31 = arith.negf %30 : vector<8x32xf32>
    %32 = math.exp %31 : vector<8x32xf32>
    %cst_19 = arith.constant 1.000000e+00 : f32
    %33 = vector.broadcast %cst_19 : f32 to vector<8x32xf32>
    %34 = arith.addf %33, %32 : vector<8x32xf32>
    %35 = arith.divf %33, %34 : vector<8x32xf32>
    %36 = vector.extract_strided_slice %29 {offsets = [0, 32], sizes = [8, 32], strides = [1, 1]} : vector<8x128xf32> to vector<8x32xf32>
    %37 = arith.negf %36 : vector<8x32xf32>
    %38 = math.exp %37 : vector<8x32xf32>
    %cst_20 = arith.constant 1.000000e+00 : f32
    %39 = vector.broadcast %cst_20 : f32 to vector<8x32xf32>
    %40 = arith.addf %39, %38 : vector<8x32xf32>
    %41 = arith.divf %39, %40 : vector<8x32xf32>
    %42 = vector.extract_strided_slice %29 {offsets = [0, 64], sizes = [8, 32], strides = [1, 1]} : vector<8x128xf32> to vector<8x32xf32>
    %43 = math.tanh %42 : vector<8x32xf32>
    %44 = vector.extract_strided_slice %29 {offsets = [0, 96], sizes = [8, 32], strides = [1, 1]} : vector<8x128xf32> to vector<8x32xf32>
    %45 = arith.negf %44 : vector<8x32xf32>
    %46 = math.exp %45 : vector<8x32xf32>
    %cst_21 = arith.constant 1.000000e+00 : f32
    %47 = vector.broadcast %cst_21 : f32 to vector<8x32xf32>
    %48 = arith.addf %47, %46 : vector<8x32xf32>
    %49 = arith.divf %47, %48 : vector<8x32xf32>
    %50 = arith.mulf %41, %8 : vector<8x32xf32>
    %51 = arith.mulf %35, %43 : vector<8x32xf32>
    %52 = arith.addf %50, %51 : vector<8x32xf32>
    %53 = math.tanh %52 : vector<8x32xf32>
    %54 = arith.mulf %49, %53 : vector<8x32xf32>
    %55 = tpu.concatenate %54, %23, %6 in 1 : vector<8x32xf32>, vector<8x32xf32>, vector<8x16xf32> -> vector<8x80xf32>
    %c0_22 = arith.constant 0 : index
    %c0_23 = arith.constant 0 : index
    %56 = vector.load %arg9[%c0_22, %c0_23] : memref<80x128xf32, #tpu.memory_space<vmem>>, vector<80x128xf32>
    %cst_24 = arith.constant dense<0.000000e+00> : vector<8x128xf32>
    %57 = tpu.matmul %55, %56, %cst_24 {dimension_numbers = #tpu.dot_dimension_numbers<[1], [0], [0], [1], [0, 0, 1, 1], [], []>} : vector<8x80xf32>, vector<80x128xf32>, vector<8x128xf32> -> vector<8x128xf32>
    %c0_25 = arith.constant 0 : index
    %c0_26 = arith.constant 0 : index
    %58 = vector.load %arg10[%c0_25, %c0_26] : memref<1x128xf32, #tpu.memory_space<vmem>>, vector<1x128xf32>
    %59 = vector.broadcast %58 : vector<1x128xf32> to vector<8x128xf32>
    %60 = arith.addf %57, %59 : vector<8x128xf32>
    %c0_27 = arith.constant 0 : index
    %c0_28 = arith.constant 0 : index
    %c0_29 = arith.constant 0 : index
    %61 = vector.load %arg11[%c0_27, %c0_28, %c0_29] : memref<1x8x128xf32, #tpu.memory_space<vmem>>, vector<1x8x128xf32>
    %62 = vector.shape_cast %61 : vector<1x8x128xf32> to vector<8x128xf32>
    %63 = vector.shape_cast %60 : vector<8x128xf32> to vector<1x8x128xf32>
    tpu.vector_store %arg11[%c0_27, %c0_28, %c0_29], %63 {strides = array<i32>} : memref<1x8x128xf32, #tpu.memory_space<vmem>>, vector<1x8x128xf32>,
    %c0_30 = arith.constant 0 : index
    %c0_31 = arith.constant 0 : index
    %64 = vector.load %arg12[%c0_30, %c0_31] : memref<8x32xf32, #tpu.memory_space<vmem>>, vector<8x32xf32>
    tpu.vector_store %arg12[%c0_30, %c0_31], %54 {strides = array<i32>} : memref<8x32xf32, #tpu.memory_space<vmem>>, vector<8x32xf32>,
    %c0_32 = arith.constant 0 : index
    %c0_33 = arith.constant 0 : index
    %65 = vector.load %arg13[%c0_32, %c0_33] : memref<8x32xf32, #tpu.memory_space<vmem>>, vector<8x32xf32>
    tpu.vector_store %arg13[%c0_32, %c0_33], %52 {strides = array<i32>} : memref<8x32xf32, #tpu.memory_space<vmem>>, vector<8x32xf32>,
    %c1_i32 = arith.constant 1 : i32
    %66 = arith.addi %arg0, %c1_i32 : i32
    %c7_i32 = arith.constant 7 : i32
    %67 = arith.cmpi slt, %66, %c7_i32 : i32
    %68 = arith.extui %67 : i1 to i32
    %c0_i32_34 = arith.constant 0 : i32
    %69 = arith.cmpi ne, %68, %c0_i32_34 : i32
    scf.if %69 {
      %70 = tpu.iota {dimensions = array<i32: 1>} : vector<8x128xi32>
      %c20_i32 = arith.constant 20 : i32
      %71 = vector.broadcast %c20_i32 : i32 to vector<8x128xi32>
      %72 = arith.cmpi slt, %70, %71 : vector<8x128xi32>
      %cst_35 = arith.constant -1.000000e+30 : f32
      %73 = vector.broadcast %cst_35 : f32 to vector<8x128xf32>
      %74 = arith.select %72, %60, %73 : vector<8x128xi1>, vector<8x128xf32>
      %cst_36 = arith.constant dense<0xFF800000> : vector<8xf32>
      %75 = vector.multi_reduction <maximumf>, %74, %cst_36 [1] : vector<8x128xf32> to vector<8xf32>
      %76 = vector.shape_cast %75 : vector<8xf32> to vector<8x1xf32>
      %77 = vector.broadcast %76 : vector<8x1xf32> to vector<8x128xf32>
      %78 = arith.cmpf oeq, %74, %77 : vector<8x128xf32>
      %c128_i32 = arith.constant 128 : i32
      %79 = vector.broadcast %c128_i32 : i32 to vector<8x128xi32>
      %80 = arith.select %78, %70, %79 : vector<8x128xi1>, vector<8x128xi32>
      %cst_37 = arith.constant dense<2147483647> : vector<8xi32>
      %81 = vector.multi_reduction <minsi>, %80, %cst_37 [1] : vector<8x128xi32> to vector<8xi32>
      %82 = vector.shape_cast %81 : vector<8xi32> to vector<8x1xi32>
      %83 = vector.broadcast %82 : vector<8x1xi32> to vector<8x128xi32>
      %84 = arith.cmpi eq, %70, %83 : vector<8x128xi32>
      %85 = arith.extui %84 : vector<8x128xi1> to vector<8x128xi32>
      %86 = arith.sitofp %85 : vector<8x128xi32> to vector<8x128xf32>
      %c0_38 = arith.constant 0 : index
      %c0_39 = arith.constant 0 : index
      %87 = vector.load %arg6[%c0_38, %c0_39] : memref<128x16xf32, #tpu.memory_space<vmem>>, vector<128x16xf32>
      %cst_40 = arith.constant dense<0.000000e+00> : vector<8x16xf32>
      %88 = tpu.matmul %86, %87, %cst_40 {dimension_numbers = #tpu.dot_dimension_numbers<[1], [0], [0], [1], [0, 0, 1, 1], [], []>} : vector<8x128xf32>, vector<128x16xf32>, vector<8x16xf32> -> vector<8x16xf32>
      %c0_41 = arith.constant 0 : index
      %c0_42 = arith.constant 0 : index
      %89 = vector.load %arg14[%c0_41, %c0_42] : memref<8x16xf32, #tpu.memory_space<vmem>>, vector<8x16xf32>
      tpu.vector_store %arg14[%c0_41, %c0_42], %88 {strides = array<i32>} : memref<8x16xf32, #tpu.memory_space<vmem>>, vector<8x16xf32>,
    } else {
    }
    return
  }
  func.func @transform_0(%arg0: i32, %arg1: memref<8xi32, #tpu.memory_space<smem>>) -> (i32, i32, i32) {
    %c0_i32 = arith.constant 0 : i32
    %c0_i32_0 = arith.constant 0 : i32
    %c0_i32_1 = arith.constant 0 : i32
    return %arg0, %c0_i32, %c0_i32_0 : i32, i32, i32
  }
  func.func @transform_1(%arg0: i32, %arg1: memref<8xi32, #tpu.memory_space<smem>>) -> (i32, i32) {
    %c0_i32 = arith.constant 0 : i32
    %c0_i32_0 = arith.constant 0 : i32
    %c0_i32_1 = arith.constant 0 : i32
    return %c0_i32, %c0_i32_0 : i32, i32
  }
  func.func @transform_2(%arg0: i32, %arg1: memref<8xi32, #tpu.memory_space<smem>>) -> (i32, i32) {
    %c0_i32 = arith.constant 0 : i32
    %c0_i32_0 = arith.constant 0 : i32
    %c0_i32_1 = arith.constant 0 : i32
    return %c0_i32, %c0_i32_0 : i32, i32
  }
  func.func @transform_3(%arg0: i32, %arg1: memref<8xi32, #tpu.memory_space<smem>>) -> (i32, i32, i32) {
    %c0_i32 = arith.constant 0 : i32
    %c0_i32_0 = arith.constant 0 : i32
    %c0_i32_1 = arith.constant 0 : i32
    %c0_i32_2 = arith.constant 0 : i32
    return %c0_i32, %c0_i32_0, %c0_i32_1 : i32, i32, i32
  }
  func.func @transform_4(%arg0: i32, %arg1: memref<8xi32, #tpu.memory_space<smem>>) -> (i32, i32) {
    %c0_i32 = arith.constant 0 : i32
    %c0_i32_0 = arith.constant 0 : i32
    %c0_i32_1 = arith.constant 0 : i32
    return %c0_i32, %c0_i32_0 : i32, i32
  }
  func.func @transform_5(%arg0: i32, %arg1: memref<8xi32, #tpu.memory_space<smem>>) -> (i32, i32) {
    %c0_i32 = arith.constant 0 : i32
    %c0_i32_0 = arith.constant 0 : i32
    %c0_i32_1 = arith.constant 0 : i32
    return %c0_i32, %c0_i32_0 : i32, i32
  }
  func.func @transform_6(%arg0: i32, %arg1: memref<8xi32, #tpu.memory_space<smem>>) -> (i32, i32) {
    %c0_i32 = arith.constant 0 : i32
    %c0_i32_0 = arith.constant 0 : i32
    %c0_i32_1 = arith.constant 0 : i32
    return %c0_i32, %c0_i32_0 : i32, i32
  }
  func.func @transform_7(%arg0: i32, %arg1: memref<8xi32, #tpu.memory_space<smem>>) -> (i32, i32) {
    %c0_i32 = arith.constant 0 : i32
    %c0_i32_0 = arith.constant 0 : i32
    %c0_i32_1 = arith.constant 0 : i32
    return %c0_i32, %c0_i32_0 : i32, i32
  }
  func.func @transform_8(%arg0: i32, %arg1: memref<8xi32, #tpu.memory_space<smem>>) -> (i32, i32) {
    %c0_i32 = arith.constant 0 : i32
    %c0_i32_0 = arith.constant 0 : i32
    %c0_i32_1 = arith.constant 0 : i32
    return %c0_i32, %c0_i32_0 : i32, i32
  }
  func.func @transform_9(%arg0: i32, %arg1: memref<8xi32, #tpu.memory_space<smem>>) -> (i32, i32, i32) {
    %c0_i32 = arith.constant 0 : i32
    %c0_i32_0 = arith.constant 0 : i32
    %c0_i32_1 = arith.constant 0 : i32
    return %arg0, %c0_i32, %c0_i32_0 : i32, i32, i32
  }
}

</mosaic_0001>

<llo_original>
// kernel: seq2seq_forward.2
$region0: #{seq2seq_forward.2}
  #allocation0 [shape = 'u32[]', space=smem, size = 0x4, offset = 0x4, fixed_abs, tag = 'smem constant byte address 0x4 - core index']
  #allocation1 [shape = 'u32[144,128]{1,0:T(1,128)}', space=vmem, size = 0x12000, scoped, tag = 'internal scratch']
  #allocation2 [shape = 'f32[8,32]{1,0:T(8,128)}', space=vmem, size = 0x1000, scoped, tag = 'scratch operand']
  #allocation3 [shape = 'f32[8,32]{1,0:T(8,128)}', space=vmem, size = 0x1000, scoped, tag = 'scratch operand']
  %s0 = inlined_call_operand.vmem [shape: f32[8,8,16], index: 0, kind: input, shape index: {}]
  %s1 = inlined_call_operand.vmem [shape: f32[48,128], index: 1, kind: input, shape index: {}]
  %s2 = inlined_call_operand.vmem [shape: f32[1,128], index: 2, kind: input, shape index: {}]
  %s3 = inlined_call_operand.vmem [shape: f32[8,8,32], index: 3, kind: output, shape index: {0}]
  %s4 = inlined_call_operand.vmem [shape: f32[8,32], index: 4, kind: output, shape index: {1}]
  %5 = xla_tuple %s3, %s4
  %s6 = sld [smem:[#allocation0]]
  $region57: #{seq2seq_forward.2} parent=0
    _
  %s8 = ssub.s32 1, %s6
  %s9 = scalar_select 0, %s8, %s6
  loop: start=0, step=1, limit=10
  $region2: #{seq2seq_forward.2} parent=0 // loop_pre_header
    _
  $region3: #{seq2seq_forward.2} parent=0 // loop_header
    %s11 = sphi 0, %s15
    %p12 = scmp.ge.s32.totalorder %s11, 10
    %s21 = sphi 0, %s23
    %s24 = sphi 0, %s21
    %s25 = sphi 0, %s24
    %s41 = sphi 0, %s25
    %s45 = sphi 0, %s45
    %s47 = sphi 0, %s45
    %s48 = sphi 0, %s47
    %s62 = sphi 0, %s48
    %s66 = sphi 0, %s66
    %s68 = sphi 0, %s66
    %s69 = sphi 0, %s68
    %s83 = sphi 0, %s69
    %s89 = sphi 0, %s91
    %s92 = sphi 0, %s89
    %s93 = sphi 0, %s92
    %s109 = sphi 0, %s93
    %s113 = sphi 0, %s113
    %s115 = sphi 0, %s113
    %s116 = sphi 0, %s115
    %s130 = sphi 0, %s116
  $region4: #{seq2seq_forward.2} parent=0 // loop_header_branch
    %14 = sbr.rel (%p12) target = $region8
  $region5: #{seq2seq_forward.2} parent=0 // loop_body
    %s16 = ssub.s32 %s11, 1
    %s17 = ssub.s32 %s11, 2
    %s18 = sadd.s32 %s11, 1
    %s19 = ssub.s32 %s11, %s18
    %p20 = scmp.eq.s32.totalorder %s19, 0
    %s22 = sadd.s32 %s21, 1
    %s23 = scalar_select %p20, %s21, %s22
    %p26 = pneg %p20
    %p27 = scmp.eq.s32.totalorder %s11, 7
    %p28 = por %p26, %p27
    %p29 = scmp.ne.s32.totalorder %s21, %s24
    %p30 = scmp.eq.s32.totalorder %s11, 0
    %p31 = por %p29, %p30
    %p32 = scmp.ne.s32.totalorder %s21, %s24
    %p33 = scmp.eq.s32.totalorder %s16, 7
    %p34 = por %p32, %p33
    %p35 = scmp.ne.s32.totalorder %s24, %s25
    %p36 = scmp.eq.s32.totalorder %s16, 0
    %p37 = por %p35, %p36
    %p38 = scmp.ne.s32.totalorder %s24, %s25
    %p39 = scmp.eq.s32.totalorder %s17, 7
    %p40 = por %p38, %p39
    %p42 = scmp.ne.s32.totalorder %s25, %s41
    %p43 = scmp.eq.s32.totalorder %s17, 0
    %p44 = por %p42, %p43
    %s46 = sadd.s32 %s45, 1
    %p49 = scmp.eq.s32.totalorder %s11, 7
    %p50 = scmp.ne.s32.totalorder %s45, %s47
    %p51 = scmp.eq.s32.totalorder %s11, 0
    %p52 = por %p50, %p51
    %p53 = scmp.ne.s32.totalorder %s45, %s47
    %p54 = scmp.eq.s32.totalorder %s16, 7
    %p55 = por %p53, %p54
    %p56 = scmp.ne.s32.totalorder %s47, %s48
    %p57 = scmp.eq.s32.totalorder %s16, 0
    %p58 = por %p56, %p57
    %p59 = scmp.ne.s32.totalorder %s47, %s48
    %p60 = scmp.eq.s32.totalorder %s17, 7
    %p61 = por %p59, %p60
    %p63 = scmp.ne.s32.totalorder %s48, %s62
    %p64 = scmp.eq.s32.totalorder %s17, 0
    %p65 = por %p63, %p64
    %s67 = sadd.s32 %s66, 1
    %p70 = scmp.eq.s32.totalorder %s11, 7
    %p71 = scmp.ne.s32.totalorder %s66, %s68
    %p72 = scmp.eq.s32.totalorder %s11, 0
    %p73 = por %p71, %p72
    %p74 = scmp.ne.s32.totalorder %s66, %s68
    %p75 = scmp.eq.s32.totalorder %s16, 7
    %p76 = por %p74, %p75
    %p77 = scmp.ne.s32.totalorder %s68, %s69
    %p78 = scmp.eq.s32.totalorder %s16, 0
    %p79 = por %p77, %p78
    %p80 = scmp.ne.s32.totalorder %s68, %s69
    %p81 = scmp.eq.s32.totalorder %s17, 7
    %p82 = por %p80, %p81
    %p84 = scmp.ne.s32.totalorder %s69, %s83
    %p85 = scmp.eq.s32.totalorder %s17, 0
    %p86 = por %p84, %p85
    %s87 = ssub.s32 %s11, %s18
    %p88 = scmp.eq.s32.totalorder %s87, 0
    %s90 = sadd.s32 %s89, 1
    %s91 = scalar_select %p88, %s89, %s90
    %p94 = pneg %p88
    %p95 = scmp.eq.s32.totalorder %s11, 7
    %p96 = por %p94, %p95
    %p97 = scmp.ne.s32.totalorder %s89, %s92
    %p98 = scmp.eq.s32.totalorder %s11, 0
    %p99 = por %p97, %p98
    %p100 = scmp.ne.s32.totalorder %s89, %s92
    %p101 = scmp.eq.s32.totalorder %s16, 7
    %p102 = por %p100, %p101
    %p103 = scmp.ne.s32.totalorder %s92, %s93
    %p104 = scmp.eq.s32.totalorder %s16, 0
    %p105 = por %p103, %p104
    %p106 = scmp.ne.s32.totalorder %s92, %s93
    %p107 = scmp.eq.s32.totalorder %s17, 7
    %p108 = por %p106, %p107
    %p110 = scmp.ne.s32.totalorder %s93, %s109
    %p111 = scmp.eq.s32.totalorder %s17, 0
    %p112 = por %p110, %p111
    %s114 = sadd.s32 %s113, 1
    %p117 = scmp.eq.s32.totalorder %s11, 7
    %p118 = scmp.ne.s32.totalorder %s113, %s115
    %p119 = scmp.eq.s32.totalorder %s11, 0
    %p120 = por %p118, %p119
    %p121 = scmp.ne.s32.totalorder %s113, %s115
    %p122 = scmp.eq.s32.totalorder %s16, 7
    %p123 = por %p121, %p122
    %p124 = scmp.ne.s32.totalorder %s115, %s116
    %p125 = scmp.eq.s32.totalorder %s16, 0
    %p126 = por %p124, %p125
    %p127 = scmp.ne.s32.totalorder %s115, %s116
    %p128 = scmp.eq.s32.totalorder %s17, 7
    %p129 = por %p127, %p128
    %p131 = scmp.ne.s32.totalorder %s116, %s130
    %p132 = scmp.eq.s32.totalorder %s17, 0
    %p133 = por %p131, %p132
    %p134 = scmp.le.s32.totalorder 1, %s11
    %p135 = scmp.lt.s32.totalorder %s11, 9
    %p136 = pnand %p134, %p135
    %p137 = pneg %p136
    // Predicated region
    $region9: #{seq2seq_forward.2} parent=5 // pred_check
      _
    $region10: #{seq2seq_forward.2} parent=5 // pred_check_branch
      %139 = sbr.rel (%p136) target = $region12
    $region11: #{seq2seq_forward.2} parent=5 // pred_region
      %s140 = ssub.s32 %s11, 1
      // Predicated region
      $region13: #{seq2seq_forward.2} parent=11 // pred_check
        %p141 = pneg %p58
      $region14: #{seq2seq_forward.2} parent=11 // pred_check_branch
        %143 = sbr.rel (%p141) target = $region16
      $region15: #{seq2seq_forward.2} parent=11 // pred_region
        _
      $region16: #{seq2seq_forward.2} parent=11 // pred_fallthru
        _
      // Predicated region
      $region17: #{seq2seq_forward.2} parent=11 // pred_check
        %p144 = pneg %p79
      $region18: #{seq2seq_forward.2} parent=11 // pred_check_branch
        %146 = sbr.rel (%p144) target = $region20
      $region19: #{seq2seq_forward.2} parent=11 // pred_region
        _
      $region20: #{seq2seq_forward.2} parent=11 // pred_fallthru
        _
    $region12: #{seq2seq_forward.2} parent=5 // pred_fallthru
      _
    %p147 = scmp.lt.s32.totalorder %s11, 8
    // Predicated region
    $region21: #{seq2seq_forward.2} parent=5 // pred_check
      %p148 = pneg %p147
    $region22: #{seq2seq_forward.2} parent=5 // pred_check_branch
      %150 = sbr.rel (%p148) target = $region24
    $region23: #{seq2seq_forward.2} parent=5 // pred_region
      // Predicated region
      $region25: #{seq2seq_forward.2} parent=23 // pred_check
        %p151 = pneg %p31
      $region26: #{seq2seq_forward.2} parent=23 // pred_check_branch
        %153 = sbr.rel (%p151) target = $region28
      $region27: #{seq2seq_forward.2} parent=23 // pred_region
        %p154 = scmp.lt.s32.totalorder %s11, 7
        %s155 = scalar_select %p154, %s11, 7
        %s156 = smul.addr %s155, 8
        %s157 = scalar_lea.vmem %s0, %s156
      $region28: #{seq2seq_forward.2} parent=23 // pred_fallthru
        _
    $region24: #{seq2seq_forward.2} parent=5 // pred_fallthru
      _
    %p158 = scmp.le.s32.totalorder 1, %s11
    %p159 = scmp.lt.s32.totalorder %s11, 9
    %p160 = pnand %p158, %p159
    %p161 = pneg %p160
    // Predicated region
    $region29: #{seq2seq_forward.2} parent=5 // pred_check
      _
    $region30: #{seq2seq_forward.2} parent=5 // pred_check_branch
      %163 = sbr.rel (%p160) target = $region32
    $region31: #{seq2seq_forward.2} parent=5 // pred_region
      %s164 = ssub.s32 %s11, 1
      %p165 = scmp.lt.s32.totalorder %s16, 7
      %s166 = scalar_select %p165, %s16, 7
      %s167 = smul.addr %s166, 8
      %s168 = scalar_lea.vmem %s0, %s167
      %p169 = pneg %p37
      %p170 = pneg %p34
      %p171 = pneg %p58
      %p172 = pneg %p55
      %p173 = pneg %p79
      %p174 = pneg %p76
      %p175 = pneg %p105
      %p176 = pneg %p102
      %p177 = scmp.lt.s32.totalorder %s16, 7
      %s178 = scalar_select %p177, %s16, 7
      %s179 = smul.addr %s178, 8
      %s180 = scalar_lea.vmem %s3, %s179
      %p181 = pneg %p126
      %p182 = pneg %p123
      %p183 = scmp.lt.s32.totalorder %s16, 7
      %s184 = scalar_select %p183, %s16, 7
      %s185 = smul.addr %s184, 8
      %s186 = scalar_lea.vmem %s0, %s185
      %p187 = scmp.lt.s32.totalorder %s16, 7
      %s188 = scalar_select %p187, %s16, 7
      %s189 = smul.addr %s188, 8
      %s190 = scalar_lea.vmem %s3, %s189
      %p191 = scmp.eq.s32.totalorder %s16, 0
      // Predicated region
      $region33: #{seq2seq_forward.2} parent=31 // pred_check
        %p192 = pneg %p191
      $region34: #{seq2seq_forward.2} parent=31 // pred_check_branch
        %194 = sbr.rel (%p192) target = $region36
      $region35: #{seq2seq_forward.2} parent=31 // pred_region
        %vm195 = vcmask 261120
        %196 = vst.msk [vmem:[#allocation2] sm:$0xff] %vm195, 0.0
        %197 = vst.msk [vmem:[#allocation3] sm:$0xff] %vm195, 0.0
      $region36: #{seq2seq_forward.2} parent=31 // pred_fallthru
        _
      %v198 = vld [vmem:[%s186] sm:$0xff]
      %v199 = vld [vmem:[#allocation2] sm:$0xff]
      %v200 = vld [vmem:[#allocation3] sm:$0xff]
      %202 = vrot.lane.b32.xlu0 %v199, 16
      %v203 = vpop.permute.xlu0 %202
      %vm205 = vcmask 130048
      %v206 = vsel %vm205, %v198, %v203
      %v207 = vld [vmem:[%s1] sm:$0xff]
      %v208 = vld [vmem:[%s1 + $0x8] sm:$0xff]
      %v209 = vld [vmem:[%s1 + $0x10] sm:$0xff]
      %v210 = vld [vmem:[%s1 + $0x18] sm:$0xff]
      %v211 = vld [vmem:[%s1 + $0x20] sm:$0xff]
      %v212 = vld [vmem:[%s1 + $0x28] sm:$0xff]
      %v213 = vld [vmem:[%s2] sm:$0x1]
      %v215 = vlaneseq
      %v216 = vshrl.u32 %v215, 7
      %v217 = vsub.s32 0, %v216
      %v218 = vrot.slane %v213, %v217
      %vm220 = vcmask 392192
      %v222 = vsel %vm220, %v206, 0
      %224 = vmatprep.subr.mxu0 0.0
      %225 = vmatpush1.msra.mxu0 %v207
      %226 = vmatprep.subr.mxu0 0.0
      %227 = vmatpush1.msra.mxu0 %v208
      %228 = vmatprep.subr.mxu0 0.0
      %229 = vmatpush1.msra.mxu0 %v209
      %230 = vmatprep.subr.mxu0 0.0
      %231 = vmatpush1.msra.mxu0 %v210
      %232 = vmatprep.subr.mxu0 0.0
      %233 = vmatpush1.msra.mxu0 %v211
      %234 = vmatprep.subr.mxu0 0.0
      %235 = vmatpush1.msra.mxu0 %v212
      %236 = vmatprep.subr.mxu0 0.0
      %237 = vmatpush1.msra.mxu0 0.0
      %238 = vmatprep.subr.mxu0 0.0
      %239 = vmatpush1.msra.mxu0 0.0
      %240 = vmatprep.subr.mxu0 0.0
      %241 = vmatpush1.msra.mxu0 0.0
      %242 = vmatprep.subr.mxu0 0.0
      %243 = vmatpush1.msra.mxu0 0.0
      %244 = vmatprep.subr.mxu0 0.0
      %245 = vmatpush1.msra.mxu0 0.0
      %246 = vmatprep.subr.mxu0 0.0
      %247 = vmatpush1.msra.mxu0 0.0
      %248 = vmatprep.subr.mxu0 0.0
      %249 = vmatpush1.msra.mxu0 0.0
      %250 = vmatprep.subr.mxu0 0.0
      %251 = vmatpush1.msra.mxu0 0.0
      %252 = vmatprep.subr.mxu0 0.0
      %253 = vmatpush1.msra.mxu0 0.0
      %254 = vmatprep.subr.mxu0 0.0
      %255 = vmatpush1.msra.mxu0 0.0
      %256 = vmatprep.subr.mxu0 0.0
      %257 = vmatpush1.msra.mxu0 0.0
      %258 = vmatprep.subr.mxu0 0.0
      %259 = vmatpush1.msra.mxu0 0.0
      %260 = vmatprep.subr.mxu0 0.0
      %261 = vmatpush1.msra.mxu0 0.0
      %262 = vmatprep.subr.mxu0 0.0
      %263 = vmatpush1.msra.mxu0 0.0
      %264 = vmatprep.subr.mxu0 0.0
      %265 = vmatpush1.msra.mxu0 0.0
      %266 = vmatprep.subr.mxu0 0.0
      %267 = vmatpush1.msra.mxu0 0.0
      %268 = vmatprep.subr.mxu0 0.0
      %269 = vmatpush1.msra.mxu0 0.0
      %270 = vmatprep.subr.mxu0 0.0
      %271 = vmatpush1.msra.mxu0 0.0
      %272 = vmatprep.subr.mxu0 0.0
      %273 = vmatpush1.msra.mxu0 0.0
      %274 = vmatprep.subr.mxu0 0.0
      %275 = vmatpush1.msra.mxu0 0.0
      %276 = vmatprep.subr.mxu0 0.0
      %277 = vmatpush1.msra.mxu0 0.0
      %278 = vmatprep.subr.mxu0 0.0
      %279 = vmatpush1.msra.mxu0 0.0
      %280 = vmatprep.subr.mxu0 0.0
      %281 = vmatpush1.msra.mxu0 0.0
      %282 = vmatprep.subr.mxu0 0.0
      %283 = vmatpush1.msra.mxu0 0.0
      %284 = vmatprep.subr.mxu0 0.0
      %285 = vmatpush1.msra.mxu0 0.0
      %286 = vmatprep.subr.mxu0 0.0
      %287 = vmatpush1.msra.mxu0 0.0
      %288 = vmatprep.mubr.f32.mxu0 0.0
      %289 = vmatmul.mubr.f32.gmra.mrb[0].mxu0 %v222
      %v290 = vpop.f32.mrb[0].mxu0
      %v291 = vadd.f32 %v218, %v290
      %v292 = vpop.f32.mrb[0].mxu0
      %293 = vdwg.mxu0
      %v294 = vxor.u32 %v291, 2147483648
      %v295 = vmul.f32 %v294, 1.442695
      %v296 = vpow.pop %v295
      %v297 = vadd.f32 %v296, 1.0
      %v298 = vrcp.pop %v297
      %v299 = vmul.f32 1.0, %v298
      %v300 = vtanh.pop %v291
      %302 = vrot.lane.b32.xlu0 %v200, 32
      %v303 = vpop.permute.xlu0 %302
      %v305 = vmul.f32 %v299, %v303
      %307 = vrot.lane.b32.xlu0 %v300, 64
      %v308 = vpop.permute.xlu0 %307
      %v310 = vmul.f32 %v299, %v308
      %312 = vrot.lane.b32.xlu0 %v310, 32
      %v313 = vpop.permute.xlu0 %312
      %v315 = vadd.f32 %v305, %v313
      %v316 = vtanh.pop %v315
      %318 = vrot.lane.b32.xlu0 %v316, 64
      %v319 = vpop.permute.xlu0 %318
      %v321 = vmul.f32 %v299, %v319
      %323 = vrot.lane.b32.xlu0 %v321, 32
      %v324 = vpop.permute.xlu0 %323
      %vm326 = vcmask 261120
      %327 = vst.msk [vmem:[#allocation2] sm:$0xff] %vm326, %v324
      %329 = vrot.lane.b32.xlu0 %v315, 96
      %v330 = vpop.permute.xlu0 %329
      %332 = vst.msk [vmem:[#allocation3] sm:$0xff] %vm326, %v330
      %333 = vst.msk [vmem:[%s190] sm:$0xff] %vm326, %v324
      %334 = vst.msk [vmem:[%s4] sm:$0xff] %vm326, %v330
      %p335 = scmp.lt.s32.totalorder %s16, 7
      %s336 = scalar_select %p335, %s16, 7
      %s337 = smul.addr %s336, 8
      %s338 = scalar_lea.vmem %s3, %s337
      // Predicated region
      $region37: #{seq2seq_forward.2} parent=31 // pred_check
        %p339 = pneg %p102
      $region38: #{seq2seq_forward.2} parent=31 // pred_check_branch
        %341 = sbr.rel (%p339) target = $region40
      $region39: #{seq2seq_forward.2} parent=31 // pred_region
        _
      $region40: #{seq2seq_forward.2} parent=31 // pred_fallthru
        _
      // Predicated region
      $region41: #{seq2seq_forward.2} parent=31 // pred_check
        %p342 = pneg %p123
      $region42: #{seq2seq_forward.2} parent=31 // pred_check_branch
        %344 = sbr.rel (%p342) target = $region44
      $region43: #{seq2seq_forward.2} parent=31 // pred_region
        _
      $region44: #{seq2seq_forward.2} parent=31 // pred_fallthru
        _
      // Predicated region
      $region45: #{seq2seq_forward.2} parent=31 // pred_check
        %p345 = pneg %p123
      $region46: #{seq2seq_forward.2} parent=31 // pred_check_branch
        %347 = sbr.rel (%p345) target = $region48
      $region47: #{seq2seq_forward.2} parent=31 // pred_region
        _
      $region48: #{seq2seq_forward.2} parent=31 // pred_fallthru
        _
    $region32: #{seq2seq_forward.2} parent=5 // pred_fallthru
      _
    %p348 = scmp.le.s32.totalorder 2, %s11
    // Predicated region
    $region49: #{seq2seq_forward.2} parent=5 // pred_check
      %p349 = pneg %p348
    $region50: #{seq2seq_forward.2} parent=5 // pred_check_branch
      %351 = sbr.rel (%p349) target = $region52
    $region51: #{seq2seq_forward.2} parent=5 // pred_region
      %s352 = ssub.s32 %s11, 2
      // Predicated region
      $region53: #{seq2seq_forward.2} parent=51 // pred_check
        %p353 = pneg %p108
      $region54: #{seq2seq_forward.2} parent=51 // pred_check_branch
        %355 = sbr.rel (%p353) target = $region56
      $region55: #{seq2seq_forward.2} parent=51 // pred_region
        %p356 = scmp.lt.s32.totalorder %s17, 7
        %s357 = scalar_select %p356, %s17, 7
        %s358 = smul.addr %s357, 8
        %s359 = scalar_lea.vmem %s3, %s358
      $region56: #{seq2seq_forward.2} parent=51 // pred_fallthru
        _
    $region52: #{seq2seq_forward.2} parent=5 // pred_fallthru
      _
  $region6: #{seq2seq_forward.2} parent=0 // loop_footer
    %s15 = sadd.s32 1, %s11
  $region7: #{seq2seq_forward.2} parent=0 // loop_footer_branch
    %10 = sbr.rel target = $region3
  $region8: #{seq2seq_forward.2} parent=0 // loop_exit
    _

// kernel: seq2seq_forward.3
$region0: #{seq2seq_forward.3}
  #allocation0 [shape = 'u32[]', space=smem, size = 0x4, offset = 0x4, fixed_abs, tag = 'smem constant byte address 0x4 - core index']
  #allocation1 [shape = 'u32[144,128]{1,0:T(1,128)}', space=vmem, size = 0x12000, scoped, tag = 'internal scratch']
  #allocation2 [shape = 'f32[8,32]{1,0:T(8,128)}', space=vmem, size = 0x1000, scoped, tag = 'scratch operand']
  #allocation3 [shape = 'f32[8,32]{1,0:T(8,128)}', space=vmem, size = 0x1000, scoped, tag = 'scratch operand']
  #allocation4 [shape = 'f32[8,16]{1,0:T(8,128)}', space=vmem, size = 0x1000, scoped, tag = 'scratch operand']
  #allocation5 [shape = 's32[1]{0}', space=sflag, size = 0x4, scoped, tag = 'scoped memory for seq2seq_forward.3']
  #allocation6 [shape = 'u8[512]{0}', space=smem, size = 0x200, scoped, tag = 'prefetched SMEM operand 0']
  %s0 = inlined_call_operand.vmem [shape: s32[8], index: 0, kind: input, shape index: {}]
  %s1 = inlined_call_operand.vmem [shape: f32[8,8,16], index: 1, kind: input, shape index: {}]
  %s2 = inlined_call_operand.vmem [shape: f32[8,32], index: 2, kind: input, shape index: {}]
  %s3 = inlined_call_operand.vmem [shape: f32[8,32], index: 3, kind: input, shape index: {}]
  %s4 = inlined_call_operand.vmem [shape: f32[8,8,32], index: 4, kind: input, shape index: {}]
  %s5 = inlined_call_operand.vmem [shape: f32[128,16], index: 5, kind: input, shape index: {}]
  %s6 = inlined_call_operand.vmem [shape: f32[80,128], index: 6, kind: input, shape index: {}]
  %s7 = inlined_call_operand.vmem [shape: f32[1,128], index: 7, kind: input, shape index: {}]
  %s8 = inlined_call_operand.vmem [shape: f32[80,128], index: 8, kind: input, shape index: {}]
  %s9 = inlined_call_operand.vmem [shape: f32[1,128], index: 9, kind: input, shape index: {}]
  %s10 = inlined_call_operand.vmem [shape: f32[7,8,128], index: 10, kind: output, shape index: {}]
  %s11 = sld [smem:[#allocation0]]
  $region81: #{seq2seq_forward.3} parent=0
    _
  %s13 = ssub.s32 1, %s11
  %s14 = scalar_select 0, %s13, %s11
  %s15 = sshll.u32 %s0, 4
  %s16 = int_to_ptr.vmem [resolvable:$true] %s15
  %18 = dma.vmem_to_smem %s16, 16, [#allocation6], [#allocation5]
  %19 = dma.done [#allocation5], 16
  %20 = sfence
  loop: start=0, step=1, limit=9
  $region2: #{seq2seq_forward.3} parent=0 // loop_pre_header
    _
  $region3: #{seq2seq_forward.3} parent=0 // loop_header
    %s22 = sphi 0, %s26
    %p23 = scmp.ge.s32.totalorder %s22, 9
    %s32 = sphi 0, %s34
    %s35 = sphi 0, %s32
    %s36 = sphi 0, %s35
    %s52 = sphi 0, %s36
    %s56 = sphi 0, %s56
    %s58 = sphi 0, %s56
    %s59 = sphi 0, %s58
    %s73 = sphi 0, %s59
    %s77 = sphi 0, %s77
    %s79 = sphi 0, %s77
    %s80 = sphi 0, %s79
    %s94 = sphi 0, %s80
    %s98 = sphi 0, %s98
    %s100 = sphi 0, %s98
    %s101 = sphi 0, %s100
    %s115 = sphi 0, %s101
    %s119 = sphi 0, %s119
    %s121 = sphi 0, %s119
    %s122 = sphi 0, %s121
    %s136 = sphi 0, %s122
    %s140 = sphi 0, %s140
    %s142 = sphi 0, %s140
    %s143 = sphi 0, %s142
    %s157 = sphi 0, %s143
    %s161 = sphi 0, %s161
    %s163 = sphi 0, %s161
    %s164 = sphi 0, %s163
    %s178 = sphi 0, %s164
    %s182 = sphi 0, %s182
    %s184 = sphi 0, %s182
    %s185 = sphi 0, %s184
    %s199 = sphi 0, %s185
    %s203 = sphi 0, %s203
    %s205 = sphi 0, %s203
    %s206 = sphi 0, %s205
    %s220 = sphi 0, %s206
    %s226 = sphi 0, %s228
    %s229 = sphi 0, %s226
    %s230 = sphi 0, %s229
    %s246 = sphi 0, %s230
  $region4: #{seq2seq_forward.3} parent=0 // loop_header_branch
    %25 = sbr.rel (%p23) target = $region8
  $region5: #{seq2seq_forward.3} parent=0 // loop_body
    %s27 = ssub.s32 %s22, 1
    %s28 = ssub.s32 %s22, 2
    %s29 = sadd.s32 %s22, 1
    %s30 = ssub.s32 %s22, %s29
    %p31 = scmp.eq.s32.totalorder %s30, 0
    %s33 = sadd.s32 %s32, 1
    %s34 = scalar_select %p31, %s32, %s33
    %p37 = pneg %p31
    %p38 = scmp.eq.s32.totalorder %s22, 6
    %p39 = por %p37, %p38
    %p40 = scmp.ne.s32.totalorder %s32, %s35
    %p41 = scmp.eq.s32.totalorder %s22, 0
    %p42 = por %p40, %p41
    %p43 = scmp.ne.s32.totalorder %s32, %s35
    %p44 = scmp.eq.s32.totalorder %s27, 6
    %p45 = por %p43, %p44
    %p46 = scmp.ne.s32.totalorder %s35, %s36
    %p47 = scmp.eq.s32.totalorder %s27, 0
    %p48 = por %p46, %p47
    %p49 = scmp.ne.s32.totalorder %s35, %s36
    %p50 = scmp.eq.s32.totalorder %s28, 6
    %p51 = por %p49, %p50
    %p53 = scmp.ne.s32.totalorder %s36, %s52
    %p54 = scmp.eq.s32.totalorder %s28, 0
    %p55 = por %p53, %p54
    %s57 = sadd.s32 %s56, 1
    %p60 = scmp.eq.s32.totalorder %s22, 6
    %p61 = scmp.ne.s32.totalorder %s56, %s58
    %p62 = scmp.eq.s32.totalorder %s22, 0
    %p63 = por %p61, %p62
    %p64 = scmp.ne.s32.totalorder %s56, %s58
    %p65 = scmp.eq.s32.totalorder %s27, 6
    %p66 = por %p64, %p65
    %p67 = scmp.ne.s32.totalorder %s58, %s59
    %p68 = scmp.eq.s32.totalorder %s27, 0
    %p69 = por %p67, %p68
    %p70 = scmp.ne.s32.totalorder %s58, %s59
    %p71 = scmp.eq.s32.totalorder %s28, 6
    %p72 = por %p70, %p71
    %p74 = scmp.ne.s32.totalorder %s59, %s73
    %p75 = scmp.eq.s32.totalorder %s28, 0
    %p76 = por %p74, %p75
    %s78 = sadd.s32 %s77, 1
    %p81 = scmp.eq.s32.totalorder %s22, 6
    %p82 = scmp.ne.s32.totalorder %s77, %s79
    %p83 = scmp.eq.s32.totalorder %s22, 0
    %p84 = por %p82, %p83
    %p85 = scmp.ne.s32.totalorder %s77, %s79
    %p86 = scmp.eq.s32.totalorder %s27, 6
    %p87 = por %p85, %p86
    %p88 = scmp.ne.s32.totalorder %s79, %s80
    %p89 = scmp.eq.s32.totalorder %s27, 0
    %p90 = por %p88, %p89
    %p91 = scmp.ne.s32.totalorder %s79, %s80
    %p92 = scmp.eq.s32.totalorder %s28, 6
    %p93 = por %p91, %p92
    %p95 = scmp.ne.s32.totalorder %s80, %s94
    %p96 = scmp.eq.s32.totalorder %s28, 0
    %p97 = por %p95, %p96
    %s99 = sadd.s32 %s98, 1
    %p102 = scmp.eq.s32.totalorder %s22, 6
    %p103 = scmp.ne.s32.totalorder %s98, %s100
    %p104 = scmp.eq.s32.totalorder %s22, 0
    %p105 = por %p103, %p104
    %p106 = scmp.ne.s32.totalorder %s98, %s100
    %p107 = scmp.eq.s32.totalorder %s27, 6
    %p108 = por %p106, %p107
    %p109 = scmp.ne.s32.totalorder %s100, %s101
    %p110 = scmp.eq.s32.totalorder %s27, 0
    %p111 = por %p109, %p110
    %p112 = scmp.ne.s32.totalorder %s100, %s101
    %p113 = scmp.eq.s32.totalorder %s28, 6
    %p114 = por %p112, %p113
    %p116 = scmp.ne.s32.totalorder %s101, %s115
    %p117 = scmp.eq.s32.totalorder %s28, 0
    %p118 = por %p116, %p117
    %s120 = sadd.s32 %s119, 1
    %p123 = scmp.eq.s32.totalorder %s22, 6
    %p124 = scmp.ne.s32.totalorder %s119, %s121
    %p125 = scmp.eq.s32.totalorder %s22, 0
    %p126 = por %p124, %p125
    %p127 = scmp.ne.s32.totalorder %s119, %s121
    %p128 = scmp.eq.s32.totalorder %s27, 6
    %p129 = por %p127, %p128
    %p130 = scmp.ne.s32.totalorder %s121, %s122
    %p131 = scmp.eq.s32.totalorder %s27, 0
    %p132 = por %p130, %p131
    %p133 = scmp.ne.s32.totalorder %s121, %s122
    %p134 = scmp.eq.s32.totalorder %s28, 6
    %p135 = por %p133, %p134
    %p137 = scmp.ne.s32.totalorder %s122, %s136
    %p138 = scmp.eq.s32.totalorder %s28, 0
    %p139 = por %p137, %p138
    %s141 = sadd.s32 %s140, 1
    %p144 = scmp.eq.s32.totalorder %s22, 6
    %p145 = scmp.ne.s32.totalorder %s140, %s142
    %p146 = scmp.eq.s32.totalorder %s22, 0
    %p147 = por %p145, %p146
    %p148 = scmp.ne.s32.totalorder %s140, %s142
    %p149 = scmp.eq.s32.totalorder %s27, 6
    %p150 = por %p148, %p149
    %p151 = scmp.ne.s32.totalorder %s142, %s143
    %p152 = scmp.eq.s32.totalorder %s27, 0
    %p153 = por %p151, %p152
    %p154 = scmp.ne.s32.totalorder %s142, %s143
    %p155 = scmp.eq.s32.totalorder %s28, 6
    %p156 = por %p154, %p155
    %p158 = scmp.ne.s32.totalorder %s143, %s157
    %p159 = scmp.eq.s32.totalorder %s28, 0
    %p160 = por %p158, %p159
    %s162 = sadd.s32 %s161, 1
    %p165 = scmp.eq.s32.totalorder %s22, 6
    %p166 = scmp.ne.s32.totalorder %s161, %s163
    %p167 = scmp.eq.s32.totalorder %s22, 0
    %p168 = por %p166, %p167
    %p169 = scmp.ne.s32.totalorder %s161, %s163
    %p170 = scmp.eq.s32.totalorder %s27, 6
    %p171 = por %p169, %p170
    %p172 = scmp.ne.s32.totalorder %s163, %s164
    %p173 = scmp.eq.s32.totalorder %s27, 0
    %p174 = por %p172, %p173
    %p175 = scmp.ne.s32.totalorder %s163, %s164
    %p176 = scmp.eq.s32.totalorder %s28, 6
    %p177 = por %p175, %p176
    %p179 = scmp.ne.s32.totalorder %s164, %s178
    %p180 = scmp.eq.s32.totalorder %s28, 0
    %p181 = por %p179, %p180
    %s183 = sadd.s32 %s182, 1
    %p186 = scmp.eq.s32.totalorder %s22, 6
    %p187 = scmp.ne.s32.totalorder %s182, %s184
    %p188 = scmp.eq.s32.totalorder %s22, 0
    %p189 = por %p187, %p188
    %p190 = scmp.ne.s32.totalorder %s182, %s184
    %p191 = scmp.eq.s32.totalorder %s27, 6
    %p192 = por %p190, %p191
    %p193 = scmp.ne.s32.totalorder %s184, %s185
    %p194 = scmp.eq.s32.totalorder %s27, 0
    %p195 = por %p193, %p194
    %p196 = scmp.ne.s32.totalorder %s184, %s185
    %p197 = scmp.eq.s32.totalorder %s28, 6
    %p198 = por %p196, %p197
    %p200 = scmp.ne.s32.totalorder %s185, %s199
    %p201 = scmp.eq.s32.totalorder %s28, 0
    %p202 = por %p200, %p201
    %s204 = sadd.s32 %s203, 1
    %p207 = scmp.eq.s32.totalorder %s22, 6
    %p208 = scmp.ne.s32.totalorder %s203, %s205
    %p209 = scmp.eq.s32.totalorder %s22, 0
    %p210 = por %p208, %p209
    %p211 = scmp.ne.s32.totalorder %s203, %s205
    %p212 = scmp.eq.s32.totalorder %s27, 6
    %p213 = por %p211, %p212
    %p214 = scmp.ne.s32.totalorder %s205, %s206
    %p215 = scmp.eq.s32.totalorder %s27, 0
    %p216 = por %p214, %p215
    %p217 = scmp.ne.s32.totalorder %s205, %s206
    %p218 = scmp.eq.s32.totalorder %s28, 6
    %p219 = por %p217, %p218
    %p221 = scmp.ne.s32.totalorder %s206, %s220
    %p222 = scmp.eq.s32.totalorder %s28, 0
    %p223 = por %p221, %p222
    %s224 = ssub.s32 %s22, %s29
    %p225 = scmp.eq.s32.totalorder %s224, 0
    %s227 = sadd.s32 %s226, 1
    %s228 = scalar_select %p225, %s226, %s227
    %p231 = pneg %p225
    %p232 = scmp.eq.s32.totalorder %s22, 6
    %p233 = por %p231, %p232
    %p234 = scmp.ne.s32.totalorder %s226, %s229
    %p235 = scmp.eq.s32.totalorder %s22, 0
    %p236 = por %p234, %p235
    %p237 = scmp.ne.s32.totalorder %s226, %s229
    %p238 = scmp.eq.s32.totalorder %s27, 6
    %p239 = por %p237, %p238
    %p240 = scmp.ne.s32.totalorder %s229, %s230
    %p241 = scmp.eq.s32.totalorder %s27, 0
    %p242 = por %p240, %p241
    %p243 = scmp.ne.s32.totalorder %s229, %s230
    %p244 = scmp.eq.s32.totalorder %s28, 6
    %p245 = por %p243, %p244
    %p247 = scmp.ne.s32.totalorder %s230, %s246
    %p248 = scmp.eq.s32.totalorder %s28, 0
    %p249 = por %p247, %p248
    %p250 = scmp.le.s32.totalorder 1, %s22
    %p251 = scmp.lt.s32.totalorder %s22, 8
    %p252 = pnand %p250, %p251
    %p253 = pneg %p252
    // Predicated region
    $region9: #{seq2seq_forward.3} parent=5 // pred_check
      _
    $region10: #{seq2seq_forward.3} parent=5 // pred_check_branch
      %255 = sbr.rel (%p252) target = $region12
    $region11: #{seq2seq_forward.3} parent=5 // pred_region
      %s256 = ssub.s32 %s22, 1
      // Predicated region
      $region13: #{seq2seq_forward.3} parent=11 // pred_check
        %p257 = pneg %p69
      $region14: #{seq2seq_forward.3} parent=11 // pred_check_branch
        %259 = sbr.rel (%p257) target = $region16
      $region15: #{seq2seq_forward.3} parent=11 // pred_region
        _
      $region16: #{seq2seq_forward.3} parent=11 // pred_fallthru
        _
      // Predicated region
      $region17: #{seq2seq_forward.3} parent=11 // pred_check
        %p260 = pneg %p90
      $region18: #{seq2seq_forward.3} parent=11 // pred_check_branch
        %262 = sbr.rel (%p260) target = $region20
      $region19: #{seq2seq_forward.3} parent=11 // pred_region
        _
      $region20: #{seq2seq_forward.3} parent=11 // pred_fallthru
        _
      // Predicated region
      $region21: #{seq2seq_forward.3} parent=11 // pred_check
        %p263 = pneg %p111
      $region22: #{seq2seq_forward.3} parent=11 // pred_check_branch
        %265 = sbr.rel (%p263) target = $region24
      $region23: #{seq2seq_forward.3} parent=11 // pred_region
        _
      $region24: #{seq2seq_forward.3} parent=11 // pred_fallthru
        _
      // Predicated region
      $region25: #{seq2seq_forward.3} parent=11 // pred_check
        %p266 = pneg %p132
      $region26: #{seq2seq_forward.3} parent=11 // pred_check_branch
        %268 = sbr.rel (%p266) target = $region28
      $region27: #{seq2seq_forward.3} parent=11 // pred_region
        _
      $region28: #{seq2seq_forward.3} parent=11 // pred_fallthru
        _
      // Predicated region
      $region29: #{seq2seq_forward.3} parent=11 // pred_check
        %p269 = pneg %p153
      $region30: #{seq2seq_forward.3} parent=11 // pred_check_branch
        %271 = sbr.rel (%p269) target = $region32
      $region31: #{seq2seq_forward.3} parent=11 // pred_region
        _
      $region32: #{seq2seq_forward.3} parent=11 // pred_fallthru
        _
      // Predicated region
      $region33: #{seq2seq_forward.3} parent=11 // pred_check
        %p272 = pneg %p174
      $region34: #{seq2seq_forward.3} parent=11 // pred_check_branch
        %274 = sbr.rel (%p272) target = $region36
      $region35: #{seq2seq_forward.3} parent=11 // pred_region
        _
      $region36: #{seq2seq_forward.3} parent=11 // pred_fallthru
        _
      // Predicated region
      $region37: #{seq2seq_forward.3} parent=11 // pred_check
        %p275 = pneg %p195
      $region38: #{seq2seq_forward.3} parent=11 // pred_check_branch
        %277 = sbr.rel (%p275) target = $region40
      $region39: #{seq2seq_forward.3} parent=11 // pred_region
        _
      $region40: #{seq2seq_forward.3} parent=11 // pred_fallthru
        _
      // Predicated region
      $region41: #{seq2seq_forward.3} parent=11 // pred_check
        %p278 = pneg %p216
      $region42: #{seq2seq_forward.3} parent=11 // pred_check_branch
        %280 = sbr.rel (%p278) target = $region44
      $region43: #{seq2seq_forward.3} parent=11 // pred_region
        _
      $region44: #{seq2seq_forward.3} parent=11 // pred_fallthru
        _
    $region12: #{seq2seq_forward.3} parent=5 // pred_fallthru
      _
    %p281 = scmp.lt.s32.totalorder %s22, 7
    // Predicated region
    $region45: #{seq2seq_forward.3} parent=5 // pred_check
      %p282 = pneg %p281
    $region46: #{seq2seq_forward.3} parent=5 // pred_check_branch
      %284 = sbr.rel (%p282) target = $region48
    $region47: #{seq2seq_forward.3} parent=5 // pred_region
      // Predicated region
      $region49: #{seq2seq_forward.3} parent=47 // pred_check
        %p285 = pneg %p42
      $region50: #{seq2seq_forward.3} parent=47 // pred_check_branch
        %287 = sbr.rel (%p285) target = $region52
      $region51: #{seq2seq_forward.3} parent=47 // pred_region
        %p288 = scmp.lt.s32.totalorder %s22, 7
        %s289 = scalar_select %p288, %s22, 7
        %s290 = smul.addr %s289, 8
        %s291 = scalar_lea.vmem %s1, %s290
      $region52: #{seq2seq_forward.3} parent=47 // pred_fallthru
        _
    $region48: #{seq2seq_forward.3} parent=5 // pred_fallthru
      _
    %p292 = scmp.le.s32.totalorder 1, %s22
    %p293 = scmp.lt.s32.totalorder %s22, 8
    %p294 = pnand %p292, %p293
    %p295 = pneg %p294
    // Predicated region
    $region53: #{seq2seq_forward.3} parent=5 // pred_check
      _
    $region54: #{seq2seq_forward.3} parent=5 // pred_check_branch
      %297 = sbr.rel (%p294) target = $region56
    $region55: #{seq2seq_forward.3} parent=5 // pred_region
      %s298 = ssub.s32 %s22, 1
      %p299 = scmp.lt.s32.totalorder %s27, 7
      %s300 = scalar_select %p299, %s27, 7
      %s301 = smul.addr %s300, 8
      %s302 = scalar_lea.vmem %s1, %s301
      %p303 = pneg %p48
      %p304 = pneg %p45
      %p305 = pneg %p69
      %p306 = pneg %p66
      %p307 = pneg %p90
      %p308 = pneg %p87
      %p309 = pneg %p111
      %p310 = pneg %p108
      %p311 = pneg %p132
      %p312 = pneg %p129
      %p313 = pneg %p153
      %p314 = pneg %p150
      %p315 = pneg %p174
      %p316 = pneg %p171
      %p317 = pneg %p195
      %p318 = pneg %p192
      %p319 = pneg %p216
      %p320 = pneg %p213
      %p321 = pneg %p242
      %p322 = pneg %p239
      %p323 = scmp.lt.s32.totalorder %s27, 6
      %s324 = scalar_select %p323, %s27, 6
      %s325 = smul.addr %s324, 8
      %s326 = scalar_lea.vmem %s10, %s325
      %p327 = scmp.lt.s32.totalorder %s27, 7
      %s328 = scalar_select %p327, %s27, 7
      %s329 = smul.addr %s328, 8
      %s330 = scalar_lea.vmem %s1, %s329
      %p331 = scmp.lt.s32.totalorder %s27, 6
      %s332 = scalar_select %p331, %s27, 6
      %s333 = smul.addr %s332, 8
      %s334 = scalar_lea.vmem %s10, %s333
      %p335 = scmp.eq.s32.totalorder %s27, 0
      // Predicated region
      $region57: #{seq2seq_forward.3} parent=55 // pred_check
        %p336 = pneg %p335
      $region58: #{seq2seq_forward.3} parent=55 // pred_check_branch
        %338 = sbr.rel (%p336) target = $region60
      $region59: #{seq2seq_forward.3} parent=55 // pred_region
        %v339 = vld [vmem:[%s2] sm:$0xff]
        %vm340 = vcmask 261120
        %341 = vst.msk [vmem:[#allocation2] sm:$0xff] %vm340, %v339
        %v342 = vld [vmem:[%s3] sm:$0xff]
        %343 = vst.msk [vmem:[#allocation3] sm:$0xff] %vm340, %v342
        %v344 = vld [vmem:[%s330] sm:$0xff]
        %vm345 = vcmask 130048
        %346 = vst.msk [vmem:[#allocation4] sm:$0xff] %vm345, %v344
      $region60: #{seq2seq_forward.3} parent=55 // pred_fallthru
        _
      %p347 = scmp.gt.s32.totalorder %s27, 0
      // Predicated region
      $region61: #{seq2seq_forward.3} parent=55 // pred_check
        %p348 = pneg %p347
      $region62: #{seq2seq_forward.3} parent=55 // pred_check_branch
        %350 = sbr.rel (%p348) target = $region64
      $region63: #{seq2seq_forward.3} parent=55 // pred_region
        %s351 = sld [smem:[#allocation6 + %s27]]
        %p352 = scmp.gt.s32.totalorder %s351, 0
        %s353 = scalar_select %p352, 1, 0
        %s354 = scvt.s32.f32 %s353
        %v355 = vld [vmem:[%s330] sm:$0xff]
        %v356 = vstv %s354
        %v357 = vmul.f32 %v356, %v355
        %s358 = ssub.f32 1.0, %s354
        %v359 = vld [vmem:[#allocation4] sm:$0xff]
        %v360 = vstv %s358
        %v361 = vmul.f32 %v360, %v359
        %v362 = vadd.f32 %v357, %v361
        %vm363 = vcmask 130048
        %364 = vst.msk [vmem:[#allocation4] sm:$0xff] %vm363, %v362
      $region64: #{seq2seq_forward.3} parent=55 // pred_fallthru
        _
      %v365 = vld [vmem:[#allocation4] sm:$0xff]
      %v366 = vld [vmem:[#allocation2] sm:$0xff]
      %v367 = vld [vmem:[#allocation3] sm:$0xff]
      %v368 = vld [vmem:[%s4] sm:$0xff]
      %v369 = vld [vmem:[%s4 + $0x8] sm:$0xff]
      %v370 = vld [vmem:[%s4 + $0x10] sm:$0xff]
      %v371 = vld [vmem:[%s4 + $0x18] sm:$0xff]
      %v372 = vld [vmem:[%s4 + $0x20] sm:$0xff]
      %v373 = vld [vmem:[%s4 + $0x28] sm:$0xff]
      %v374 = vld [vmem:[%s4 + $0x30] sm:$0xff]
      %v375 = vld [vmem:[%s4 + $0x38] sm:$0xff]
      %v377 = vcombine.high %v366, %v366
      %v379 = vunpack.c.l.s4 1966171168
      %v380 = vunpack.c.0.s8 %v379
      %v381 = vlaneseq
      %v382 = vshrl.u32 %v381, 7
      %v383 = vsub.s32 %v380, %v382
      %v384 = vrot.slane %v366, %v383
      %v386 = vunpack.c.l.s4 1966171168
      %v387 = vunpack.c.0.s8 %v386
      %v388 = vlaneseq
      %v389 = vshrl.u32 %v388, 7
      %v390 = vsub.s32 %v387, %v389
      %v391 = vrot.slane %v377, %v390
      %v392 = vcombine.high %v384, %v384
      %v393 = vcombine.high %v391, %v391
      %v395 = vunpack.c.l.s4 1966171168
      %v396 = vunpack.c.0.s8 %v395
      %v397 = vlaneseq
      %v398 = vshrl.u32 %v397, 7
      %v399 = vsub.s32 %v396, %v398
      %v400 = vrot.slane %v384, %v399
      %v402 = vunpack.c.l.s4 1966171168
      %v403 = vunpack.c.0.s8 %v402
      %v404 = vlaneseq
      %v405 = vshrl.u32 %v404, 7
      %v406 = vsub.s32 %v403, %v405
      %v407 = vrot.slane %v391, %v406
      %v409 = vunpack.c.l.s4 1966171168
      %v410 = vunpack.c.0.s8 %v409
      %v411 = vlaneseq
      %v412 = vshrl.u32 %v411, 7
      %v413 = vsub.s32 %v410, %v412
      %v414 = vrot.slane %v392, %v413
      %v416 = vunpack.c.l.s4 1966171168
      %v417 = vunpack.c.0.s8 %v416
      %v418 = vlaneseq
      %v419 = vshrl.u32 %v418, 7
      %v420 = vsub.s32 %v417, %v419
      %v421 = vrot.slane %v393, %v420
      %v422 = vcombine.high %v400, %v400
      %v423 = vcombine.high %v407, %v407
      %v424 = vcombine.high %v414, %v414
      %v425 = vcombine.high %v421, %v421
      %vm426 = vcmask 261120
      %v427 = vsel %vm426, %v400, 0
      %v430 = vsel %vm426, %v368, 0
      %432 = vmatprep.subr.mxu0 0.0
      %433 = vmatpush1.xpose.msra.mxu0 %v430
      %434 = vmatprep.subr.mxu0 0.0
      %435 = vmatpush1.xpose.msra.mxu0 0.0
      %436 = vmatprep.subr.mxu0 0.0
      %437 = vmatpush1.xpose.msra.mxu0 0.0
      %438 = vmatprep.subr.mxu0 0.0
      %439 = vmatpush1.xpose.msra.mxu0 0.0
      %440 = vmatprep.subr.mxu0 0.0
      %441 = vmatpush1.xpose.msra.mxu0 0.0
      %442 = vmatprep.subr.mxu0 0.0
      %443 = vmatpush1.xpose.msra.mxu0 0.0
      %444 = vmatprep.subr.mxu0 0.0
      %445 = vmatpush1.xpose.msra.mxu0 0.0
      %446 = vmatprep.subr.mxu0 0.0
      %447 = vmatpush1.xpose.msra.mxu0 0.0
      %448 = vmatprep.subr.mxu0 0.0
      %449 = vmatpush1.xpose.msra.mxu0 0.0
      %450 = vmatprep.subr.mxu0 0.0
      %451 = vmatpush1.xpose.msra.mxu0 0.0
      %452 = vmatprep.subr.mxu0 0.0
      %453 = vmatpush1.xpose.msra.mxu0 0.0
      %454 = vmatprep.subr.mxu0 0.0
      %455 = vmatpush1.xpose.msra.mxu0 0.0
      %456 = vmatprep.subr.mxu0 0.0
      %457 = vmatpush1.xpose.msra.mxu0 0.0
      %458 = vmatprep.subr.mxu0 0.0
      %459 = vmatpush1.xpose.msra.mxu0 0.0
      %460 = vmatprep.subr.mxu0 0.0
      %461 = vmatpush1.xpose.msra.mxu0 0.0
      %462 = vmatprep.subr.mxu0 0.0
      %463 = vmatpush1.xpose.msra.mxu0 0.0
      %464 = vmatprep.subr.mxu0 0.0
      %465 = vmatpush1.xpose.msra.mxu0 0.0
      %466 = vmatprep.subr.mxu0 0.0
      %467 = vmatpush1.xpose.msra.mxu0 0.0
      %468 = vmatprep.subr.mxu0 0.0
      %469 = vmatpush1.xpose.msra.mxu0 0.0
      %470 = vmatprep.subr.mxu0 0.0
      %471 = vmatpush1.xpose.msra.mxu0 0.0
      %472 = vmatprep.subr.mxu0 0.0
      %473 = vmatpush1.xpose.msra.mxu0 0.0
      %474 = vmatprep.subr.mxu0 0.0
      %475 = vmatpush1.xpose.msra.mxu0 0.0
      %476 = vmatprep.subr.mxu0 0.0
      %477 = vmatpush1.xpose.msra.mxu0 0.0
      %478 = vmatprep.subr.mxu0 0.0
      %479 = vmatpush1.xpose.msra.mxu0 0.0
      %480 = vmatprep.subr.mxu0 0.0
      %481 = vmatpush1.xpose.msra.mxu0 0.0
      %482 = vmatprep.subr.mxu0 0.0
      %483 = vmatpush1.xpose.msra.mxu0 0.0
      %484 = vmatprep.subr.mxu0 0.0
      %485 = vmatpush1.xpose.msra.mxu0 0.0
      %486 = vmatprep.subr.mxu0 0.0
      %487 = vmatpush1.xpose.msra.mxu0 0.0
      %488 = vmatprep.subr.mxu0 0.0
      %489 = vmatpush1.xpose.msra.mxu0 0.0
      %490 = vmatprep.subr.mxu0 0.0
      %491 = vmatpush1.xpose.msra.mxu0 0.0
      %492 = vmatprep.subr.mxu0 0.0
      %493 = vmatpush1.xpose.msra.mxu0 0.0
      %494 = vmatprep.subr.mxu0 0.0
      %495 = vmatpush1.xpose.msra.mxu0 0.0
      %496 = vmatprep.mubr.f32.mxu0 0.0
      %497 = vmatmul.mubr.f32.gmra.mrb[0].mxu0 %v427
      %v498 = vpop.f32.mrb[0].mxu0
      %v499 = vadd.f32 0.0, %v498
      %v500 = vpop.f32.mrb[0].mxu0
      %501 = vdwg.mxu0
      %v502 = vsel %vm426, %v414, 0
      %v505 = vsel %vm426, %v369, 0
      %507 = vmatprep.subr.mxu0 0.0
      %508 = vmatpush1.xpose.msra.mxu0 %v505
      %509 = vmatprep.subr.mxu0 0.0
      %510 = vmatpush1.xpose.msra.mxu0 0.0
      %511 = vmatprep.subr.mxu0 0.0
      %512 = vmatpush1.xpose.msra.mxu0 0.0
      %513 = vmatprep.subr.mxu0 0.0
      %514 = vmatpush1.xpose.msra.mxu0 0.0
      %515 = vmatprep.subr.mxu0 0.0
      %516 = vmatpush1.xpose.msra.mxu0 0.0
      %517 = vmatprep.subr.mxu0 0.0
      %518 = vmatpush1.xpose.msra.mxu0 0.0
      %519 = vmatprep.subr.mxu0 0.0
      %520 = vmatpush1.xpose.msra.mxu0 0.0
      %521 = vmatprep.subr.mxu0 0.0
      %522 = vmatpush1.xpose.msra.mxu0 0.0
      %523 = vmatprep.subr.mxu0 0.0
      %524 = vmatpush1.xpose.msra.mxu0 0.0
      %525 = vmatprep.subr.mxu0 0.0
      %526 = vmatpush1.xpose.msra.mxu0 0.0
      %527 = vmatprep.subr.mxu0 0.0
      %528 = vmatpush1.xpose.msra.mxu0 0.0
      %529 = vmatprep.subr.mxu0 0.0
      %530 = vmatpush1.xpose.msra.mxu0 0.0
      %531 = vmatprep.subr.mxu0 0.0
      %532 = vmatpush1.xpose.msra.mxu0 0.0
      %533 = vmatprep.subr.mxu0 0.0
      %534 = vmatpush1.xpose.msra.mxu0 0.0
      %535 = vmatprep.subr.mxu0 0.0
      %536 = vmatpush1.xpose.msra.mxu0 0.0
      %537 = vmatprep.subr.mxu0 0.0
      %538 = vmatpush1.xpose.msra.mxu0 0.0
      %539 = vmatprep.subr.mxu0 0.0
      %540 = vmatpush1.xpose.msra.mxu0 0.0
      %541 = vmatprep.subr.mxu0 0.0
      %542 = vmatpush1.xpose.msra.mxu0 0.0
      %543 = vmatprep.subr.mxu0 0.0
      %544 = vmatpush1.xpose.msra.mxu0 0.0
      %545 = vmatprep.subr.mxu0 0.0
      %546 = vmatpush1.xpose.msra.mxu0 0.0
      %547 = vmatprep.subr.mxu0 0.0
      %548 = vmatpush1.xpose.msra.mxu0 0.0
      %549 = vmatprep.subr.mxu0 0.0
      %550 = vmatpush1.xpose.msra.mxu0 0.0
      %551 = vmatprep.subr.mxu0 0.0
      %552 = vmatpush1.xpose.msra.mxu0 0.0
      %553 = vmatprep.subr.mxu0 0.0
      %554 = vmatpush1.xpose.msra.mxu0 0.0
      %555 = vmatprep.subr.mxu0 0.0
      %556 = vmatpush1.xpose.msra.mxu0 0.0
      %557 = vmatprep.subr.mxu0 0.0
      %558 = vmatpush1.xpose.msra.mxu0 0.0
      %559 = vmatprep.subr.mxu0 0.0
      %560 = vmatpush1.xpose.msra.mxu0 0.0
      %561 = vmatprep.subr.mxu0 0.0
      %562 = vmatpush1.xpose.msra.mxu0 0.0
      %563 = vmatprep.subr.mxu0 0.0
      %564 = vmatpush1.xpose.msra.mxu0 0.0
      %565 = vmatprep.subr.mxu0 0.0
      %566 = vmatpush1.xpose.msra.mxu0 0.0
      %567 = vmatprep.subr.mxu0 0.0
      %568 = vmatpush1.xpose.msra.mxu0 0.0
      %569 = vmatprep.subr.mxu0 0.0
      %570 = vmatpush1.xpose.msra.mxu0 0.0
      %571 = vmatprep.mubr.f32.mxu0 0.0
      %572 = vmatmul.mubr.f32.gmra.mrb[0].mxu0 %v502
      %v573 = vpop.f32.mrb[0].mxu0
      %v574 = vadd.f32 0.0, %v573
      %v575 = vpop.f32.mrb[0].mxu0
      %576 = vdwg.mxu0
      %v577 = vsel %vm426, %v422, 0
      %v580 = vsel %vm426, %v370, 0
      %582 = vmatprep.subr.mxu0 0.0
      %583 = vmatpush1.xpose.msra.mxu0 %v580
      %584 = vmatprep.subr.mxu0 0.0
      %585 = vmatpush1.xpose.msra.mxu0 0.0
      %586 = vmatprep.subr.mxu0 0.0
      %587 = vmatpush1.xpose.msra.mxu0 0.0
      %588 = vmatprep.subr.mxu0 0.0
      %589 = vmatpush1.xpose.msra.mxu0 0.0
      %590 = vmatprep.subr.mxu0 0.0
      %591 = vmatpush1.xpose.msra.mxu0 0.0
      %592 = vmatprep.subr.mxu0 0.0
      %593 = vmatpush1.xpose.msra.mxu0 0.0
      %594 = vmatprep.subr.mxu0 0.0
      %595 = vmatpush1.xpose.msra.mxu0 0.0
      %596 = vmatprep.subr.mxu0 0.0
      %597 = vmatpush1.xpose.msra.mxu0 0.0
      %598 = vmatprep.subr.mxu0 0.0
      %599 = vmatpush1.xpose.msra.mxu0 0.0
      %600 = vmatprep.subr.mxu0 0.0
      %601 = vmatpush1.xpose.msra.mxu0 0.0
      %602 = vmatprep.subr.mxu0 0.0
      %603 = vmatpush1.xpose.msra.mxu0 0.0
      %604 = vmatprep.subr.mxu0 0.0
      %605 = vmatpush1.xpose.msra.mxu0 0.0
      %606 = vmatprep.subr.mxu0 0.0
      %607 = vmatpush1.xpose.msra.mxu0 0.0
      %608 = vmatprep.subr.mxu0 0.0
      %609 = vmatpush1.xpose.msra.mxu0 0.0
      %610 = vmatprep.subr.mxu0 0.0
      %611 = vmatpush1.xpose.msra.mxu0 0.0
      %612 = vmatprep.subr.mxu0 0.0
      %613 = vmatpush1.xpose.msra.mxu0 0.0
      %614 = vmatprep.subr.mxu0 0.0
      %615 = vmatpush1.xpose.msra.mxu0 0.0
      %616 = vmatprep.subr.mxu0 0.0
      %617 = vmatpush1.xpose.msra.mxu0 0.0
      %618 = vmatprep.subr.mxu0 0.0
      %619 = vmatpush1.xpose.msra.mxu0 0.0
      %620 = vmatprep.subr.mxu0 0.0
      %621 = vmatpush1.xpose.msra.mxu0 0.0
      %622 = vmatprep.subr.mxu0 0.0
      %623 = vmatpush1.xpose.msra.mxu0 0.0
      %624 = vmatprep.subr.mxu0 0.0
      %625 = vmatpush1.xpose.msra.mxu0 0.0
      %626 = vmatprep.subr.mxu0 0.0
      %627 = vmatpush1.xpose.msra.mxu0 0.0
      %628 = vmatprep.subr.mxu0 0.0
      %629 = vmatpush1.xpose.msra.mxu0 0.0
      %630 = vmatprep.subr.mxu0 0.0
      %631 = vmatpush1.xpose.msra.mxu0 0.0
      %632 = vmatprep.subr.mxu0 0.0
      %633 = vmatpush1.xpose.msra.mxu0 0.0
      %634 = vmatprep.subr.mxu0 0.0
      %635 = vmatpush1.xpose.msra.mxu0 0.0
      %636 = vmatprep.subr.mxu0 0.0
      %637 = vmatpush1.xpose.msra.mxu0 0.0
      %638 = vmatprep.subr.mxu0 0.0
      %639 = vmatpush1.xpose.msra.mxu0 0.0
      %640 = vmatprep.subr.mxu0 0.0
      %641 = vmatpush1.xpose.msra.mxu0 0.0
      %642 = vmatprep.subr.mxu0 0.0
      %643 = vmatpush1.xpose.msra.mxu0 0.0
      %644 = vmatprep.subr.mxu0 0.0
      %645 = vmatpush1.xpose.msra.mxu0 0.0
      %646 = vmatprep.mubr.f32.mxu0 0.0
      %647 = vmatmul.mubr.f32.gmra.mrb[0].mxu0 %v577
      %v648 = vpop.f32.mrb[0].mxu0
      %v649 = vadd.f32 0.0, %v648
      %v650 = vpop.f32.mrb[0].mxu0
      %651 = vdwg.mxu0
      %v652 = vsel %vm426, %v424, 0
      %v655 = vsel %vm426, %v371, 0
      %657 = vmatprep.subr.mxu0 0.0
      %658 = vmatpush1.xpose.msra.mxu0 %v655
      %659 = vmatprep.subr.mxu0 0.0
      %660 = vmatpush1.xpose.msra.mxu0 0.0
      %661 = vmatprep.subr.mxu0 0.0
      %662 = vmatpush1.xpose.msra.mxu0 0.0
      %663 = vmatprep.subr.mxu0 0.0
      %664 = vmatpush1.xpose.msra.mxu0 0.0
      %665 = vmatprep.subr.mxu0 0.0
      %666 = vmatpush1.xpose.msra.mxu0 0.0
      %667 = vmatprep.subr.mxu0 0.0
      %668 = vmatpush1.xpose.msra.mxu0 0.0
      %669 = vmatprep.subr.mxu0 0.0
      %670 = vmatpush1.xpose.msra.mxu0 0.0
      %671 = vmatprep.subr.mxu0 0.0
      %672 = vmatpush1.xpose.msra.mxu0 0.0
      %673 = vmatprep.subr.mxu0 0.0
      %674 = vmatpush1.xpose.msra.mxu0 0.0
      %675 = vmatprep.subr.mxu0 0.0
      %676 = vmatpush1.xpose.msra.mxu0 0.0
      %677 = vmatprep.subr.mxu0 0.0
      %678 = vmatpush1.xpose.msra.mxu0 0.0
      %679 = vmatprep.subr.mxu0 0.0
      %680 = vmatpush1.xpose.msra.mxu0 0.0
      %681 = vmatprep.subr.mxu0 0.0
      %682 = vmatpush1.xpose.msra.mxu0 0.0
      %683 = vmatprep.subr.mxu0 0.0
      %684 = vmatpush1.xpose.msra.mxu0 0.0
      %685 = vmatprep.subr.mxu0 0.0
      %686 = vmatpush1.xpose.msra.mxu0 0.0
      %687 = vmatprep.subr.mxu0 0.0
      %688 = vmatpush1.xpose.msra.mxu0 0.0
      %689 = vmatprep.subr.mxu0 0.0
      %690 = vmatpush1.xpose.msra.mxu0 0.0
      %691 = vmatprep.subr.mxu0 0.0
      %692 = vmatpush1.xpose.msra.mxu0 0.0
      %693 = vmatprep.subr.mxu0 0.0
      %694 = vmatpush1.xpose.msra.mxu0 0.0
      %695 = vmatprep.subr.mxu0 0.0
      %696 = vmatpush1.xpose.msra.mxu0 0.0
      %697 = vmatprep.subr.mxu0 0.0
      %698 = vmatpush1.xpose.msra.mxu0 0.0
      %699 = vmatprep.subr.mxu0 0.0
      %700 = vmatpush1.xpose.msra.mxu0 0.0
      %701 = vmatprep.subr.mxu0 0.0
      %702 = vmatpush1.xpose.msra.mxu0 0.0
      %703 = vmatprep.subr.mxu0 0.0
      %704 = vmatpush1.xpose.msra.mxu0 0.0
      %705 = vmatprep.subr.mxu0 0.0
      %706 = vmatpush1.xpose.msra.mxu0 0.0
      %707 = vmatprep.subr.mxu0 0.0
      %708 = vmatpush1.xpose.msra.mxu0 0.0
      %709 = vmatprep.subr.mxu0 0.0
      %710 = vmatpush1.xpose.msra.mxu0 0.0
      %711 = vmatprep.subr.mxu0 0.0
      %712 = vmatpush1.xpose.msra.mxu0 0.0
      %713 = vmatprep.subr.mxu0 0.0
      %714 = vmatpush1.xpose.msra.mxu0 0.0
      %715 = vmatprep.subr.mxu0 0.0
      %716 = vmatpush1.xpose.msra.mxu0 0.0
      %717 = vmatprep.subr.mxu0 0.0
      %718 = vmatpush1.xpose.msra.mxu0 0.0
      %719 = vmatprep.subr.mxu0 0.0
      %720 = vmatpush1.xpose.msra.mxu0 0.0
      %721 = vmatprep.mubr.f32.mxu0 0.0
      %722 = vmatmul.mubr.f32.gmra.mrb[0].mxu0 %v652
      %v723 = vpop.f32.mrb[0].mxu0
      %v724 = vadd.f32 0.0, %v723
      %v725 = vpop.f32.mrb[0].mxu0
      %726 = vdwg.mxu0
      %v727 = vsel %vm426, %v407, 0
      %v730 = vsel %vm426, %v372, 0
      %732 = vmatprep.subr.mxu0 0.0
      %733 = vmatpush1.xpose.msra.mxu0 %v730
      %734 = vmatprep.subr.mxu0 0.0
      %735 = vmatpush1.xpose.msra.mxu0 0.0
      %736 = vmatprep.subr.mxu0 0.0
      %737 = vmatpush1.xpose.msra.mxu0 0.0
      %738 = vmatprep.subr.mxu0 0.0
      %739 = vmatpush1.xpose.msra.mxu0 0.0
      %740 = vmatprep.subr.mxu0 0.0
      %741 = vmatpush1.xpose.msra.mxu0 0.0
      %742 = vmatprep.subr.mxu0 0.0
      %743 = vmatpush1.xpose.msra.mxu0 0.0
      %744 = vmatprep.subr.mxu0 0.0
      %745 = vmatpush1.xpose.msra.mxu0 0.0
      %746 = vmatprep.subr.mxu0 0.0
      %747 = vmatpush1.xpose.msra.mxu0 0.0
      %748 = vmatprep.subr.mxu0 0.0
      %749 = vmatpush1.xpose.msra.mxu0 0.0
      %750 = vmatprep.subr.mxu0 0.0
      %751 = vmatpush1.xpose.msra.mxu0 0.0
      %752 = vmatprep.subr.mxu0 0.0
      %753 = vmatpush1.xpose.msra.mxu0 0.0
      %754 = vmatprep.subr.mxu0 0.0
      %755 = vmatpush1.xpose.msra.mxu0 0.0
      %756 = vmatprep.subr.mxu0 0.0
      %757 = vmatpush1.xpose.msra.mxu0 0.0
      %758 = vmatprep.subr.mxu0 0.0
      %759 = vmatpush1.xpose.msra.mxu0 0.0
      %760 = vmatprep.subr.mxu0 0.0
      %761 = vmatpush1.xpose.msra.mxu0 0.0
      %762 = vmatprep.subr.mxu0 0.0
      %763 = vmatpush1.xpose.msra.mxu0 0.0
      %764 = vmatprep.subr.mxu0 0.0
      %765 = vmatpush1.xpose.msra.mxu0 0.0
      %766 = vmatprep.subr.mxu0 0.0
      %767 = vmatpush1.xpose.msra.mxu0 0.0
      %768 = vmatprep.subr.mxu0 0.0
      %769 = vmatpush1.xpose.msra.mxu0 0.0
      %770 = vmatprep.subr.mxu0 0.0
      %771 = vmatpush1.xpose.msra.mxu0 0.0
      %772 = vmatprep.subr.mxu0 0.0
      %773 = vmatpush1.xpose.msra.mxu0 0.0
      %774 = vmatprep.subr.mxu0 0.0
      %775 = vmatpush1.xpose.msra.mxu0 0.0
      %776 = vmatprep.subr.mxu0 0.0
      %777 = vmatpush1.xpose.msra.mxu0 0.0
      %778 = vmatprep.subr.mxu0 0.0
      %779 = vmatpush1.xpose.msra.mxu0 0.0
      %780 = vmatprep.subr.mxu0 0.0
      %781 = vmatpush1.xpose.msra.mxu0 0.0
      %782 = vmatprep.subr.mxu0 0.0
      %783 = vmatpush1.xpose.msra.mxu0 0.0
      %784 = vmatprep.subr.mxu0 0.0
      %785 = vmatpush1.xpose.msra.mxu0 0.0
      %786 = vmatprep.subr.mxu0 0.0
      %787 = vmatpush1.xpose.msra.mxu0 0.0
      %788 = vmatprep.subr.mxu0 0.0
      %789 = vmatpush1.xpose.msra.mxu0 0.0
      %790 = vmatprep.subr.mxu0 0.0
      %791 = vmatpush1.xpose.msra.mxu0 0.0
      %792 = vmatprep.subr.mxu0 0.0
      %793 = vmatpush1.xpose.msra.mxu0 0.0
      %794 = vmatprep.subr.mxu0 0.0
      %795 = vmatpush1.xpose.msra.mxu0 0.0
      %796 = vmatprep.mubr.f32.mxu0 0.0
      %797 = vmatmul.mubr.f32.gmra.mrb[0].mxu0 %v727
      %v798 = vpop.f32.mrb[0].mxu0
      %v799 = vadd.f32 0.0, %v798
      %v800 = vpop.f32.mrb[0].mxu0
      %801 = vdwg.mxu0
      %v802 = vsel %vm426, %v421, 0
      %v805 = vsel %vm426, %v373, 0
      %807 = vmatprep.subr.mxu0 0.0
      %808 = vmatpush1.xpose.msra.mxu0 %v805
      %809 = vmatprep.subr.mxu0 0.0
      %810 = vmatpush1.xpose.msra.mxu0 0.0
      %811 = vmatprep.subr.mxu0 0.0
      %812 = vmatpush1.xpose.msra.mxu0 0.0
      %813 = vmatprep.subr.mxu0 0.0
      %814 = vmatpush1.xpose.msra.mxu0 0.0
      %815 = vmatprep.subr.mxu0 0.0
      %816 = vmatpush1.xpose.msra.mxu0 0.0
      %817 = vmatprep.subr.mxu0 0.0
      %818 = vmatpush1.xpose.msra.mxu0 0.0
      %819 = vmatprep.subr.mxu0 0.0
      %820 = vmatpush1.xpose.msra.mxu0 0.0
      %821 = vmatprep.subr.mxu0 0.0
      %822 = vmatpush1.xpose.msra.mxu0 0.0
      %823 = vmatprep.subr.mxu0 0.0
      %824 = vmatpush1.xpose.msra.mxu0 0.0
      %825 = vmatprep.subr.mxu0 0.0
      %826 = vmatpush1.xpose.msra.mxu0 0.0
      %827 = vmatprep.subr.mxu0 0.0
      %828 = vmatpush1.xpose.msra.mxu0 0.0
      %829 = vmatprep.subr.mxu0 0.0
      %830 = vmatpush1.xpose.msra.mxu0 0.0
      %831 = vmatprep.subr.mxu0 0.0
      %832 = vmatpush1.xpose.msra.mxu0 0.0
      %833 = vmatprep.subr.mxu0 0.0
      %834 = vmatpush1.xpose.msra.mxu0 0.0
      %835 = vmatprep.subr.mxu0 0.0
      %836 = vmatpush1.xpose.msra.mxu0 0.0
      %837 = vmatprep.subr.mxu0 0.0
      %838 = vmatpush1.xpose.msra.mxu0 0.0
      %839 = vmatprep.subr.mxu0 0.0
      %840 = vmatpush1.xpose.msra.mxu0 0.0
      %841 = vmatprep.subr.mxu0 0.0
      %842 = vmatpush1.xpose.msra.mxu0 0.0
      %843 = vmatprep.subr.mxu0 0.0
      %844 = vmatpush1.xpose.msra.mxu0 0.0
      %845 = vmatprep.subr.mxu0 0.0
      %846 = vmatpush1.xpose.msra.mxu0 0.0
      %847 = vmatprep.subr.mxu0 0.0
      %848 = vmatpush1.xpose.msra.mxu0 0.0
      %849 = vmatprep.subr.mxu0 0.0
      %850 = vmatpush1.xpose.msra.mxu0 0.0
      %851 = vmatprep.subr.mxu0 0.0
      %852 = vmatpush1.xpose.msra.mxu0 0.0
      %853 = vmatprep.subr.mxu0 0.0
      %854 = vmatpush1.xpose.msra.mxu0 0.0
      %855 = vmatprep.subr.mxu0 0.0
      %856 = vmatpush1.xpose.msra.mxu0 0.0
      %857 = vmatprep.subr.mxu0 0.0
      %858 = vmatpush1.xpose.msra.mxu0 0.0
      %859 = vmatprep.subr.mxu0 0.0
      %860 = vmatpush1.xpose.msra.mxu0 0.0
      %861 = vmatprep.subr.mxu0 0.0
      %862 = vmatpush1.xpose.msra.mxu0 0.0
      %863 = vmatprep.subr.mxu0 0.0
      %864 = vmatpush1.xpose.msra.mxu0 0.0
      %865 = vmatprep.subr.mxu0 0.0
      %866 = vmatpush1.xpose.msra.mxu0 0.0
      %867 = vmatprep.subr.mxu0 0.0
      %868 = vmatpush1.xpose.msra.mxu0 0.0
      %869 = vmatprep.subr.mxu0 0.0
      %870 = vmatpush1.xpose.msra.mxu0 0.0
      %871 = vmatprep.mubr.f32.mxu0 0.0
      %872 = vmatmul.mubr.f32.gmra.mrb[0].mxu0 %v802
      %v873 = vpop.f32.mrb[0].mxu0
      %v874 = vadd.f32 0.0, %v873
      %v875 = vpop.f32.mrb[0].mxu0
      %876 = vdwg.mxu0
      %v877 = vsel %vm426, %v423, 0
      %v880 = vsel %vm426, %v374, 0
      %882 = vmatprep.subr.mxu0 0.0
      %883 = vmatpush1.xpose.msra.mxu0 %v880
      %884 = vmatprep.subr.mxu0 0.0
      %885 = vmatpush1.xpose.msra.mxu0 0.0
      %886 = vmatprep.subr.mxu0 0.0
      %887 = vmatpush1.xpose.msra.mxu0 0.0
      %888 = vmatprep.subr.mxu0 0.0
      %889 = vmatpush1.xpose.msra.mxu0 0.0
      %890 = vmatprep.subr.mxu0 0.0
      %891 = vmatpush1.xpose.msra.mxu0 0.0
      %892 = vmatprep.subr.mxu0 0.0
      %893 = vmatpush1.xpose.msra.mxu0 0.0
      %894 = vmatprep.subr.mxu0 0.0
      %895 = vmatpush1.xpose.msra.mxu0 0.0
      %896 = vmatprep.subr.mxu0 0.0
      %897 = vmatpush1.xpose.msra.mxu0 0.0
      %898 = vmatprep.subr.mxu0 0.0
      %899 = vmatpush1.xpose.msra.mxu0 0.0
      %900 = vmatprep.subr.mxu0 0.0
      %901 = vmatpush1.xpose.msra.mxu0 0.0
      %902 = vmatprep.subr.mxu0 0.0
      %903 = vmatpush1.xpose.msra.mxu0 0.0
      %904 = vmatprep.subr.mxu0 0.0
      %905 = vmatpush1.xpose.msra.mxu0 0.0
      %906 = vmatprep.subr.mxu0 0.0
      %907 = vmatpush1.xpose.msra.mxu0 0.0
      %908 = vmatprep.subr.mxu0 0.0
      %909 = vmatpush1.xpose.msra.mxu0 0.0
      %910 = vmatprep.subr.mxu0 0.0
      %911 = vmatpush1.xpose.msra.mxu0 0.0
      %912 = vmatprep.subr.mxu0 0.0
      %913 = vmatpush1.xpose.msra.mxu0 0.0
      %914 = vmatprep.subr.mxu0 0.0
      %915 = vmatpush1.xpose.msra.mxu0 0.0
      %916 = vmatprep.subr.mxu0 0.0
      %917 = vmatpush1.xpose.msra.mxu0 0.0
      %918 = vmatprep.subr.mxu0 0.0
      %919 = vmatpush1.xpose.msra.mxu0 0.0
      %920 = vmatprep.subr.mxu0 0.0
      %921 = vmatpush1.xpose.msra.mxu0 0.0
      %922 = vmatprep.subr.mxu0 0.0
      %923 = vmatpush1.xpose.msra.mxu0 0.0
      %924 = vmatprep.subr.mxu0 0.0
      %925 = vmatpush1.xpose.msra.mxu0 0.0
      %926 = vmatprep.subr.mxu0 0.0
      %927 = vmatpush1.xpose.msra.mxu0 0.0
      %928 = vmatprep.subr.mxu0 0.0
      %929 = vmatpush1.xpose.msra.mxu0 0.0
      %930 = vmatprep.subr.mxu0 0.0
      %931 = vmatpush1.xpose.msra.mxu0 0.0
      %932 = vmatprep.subr.mxu0 0.0
      %933 = vmatpush1.xpose.msra.mxu0 0.0
      %934 = vmatprep.subr.mxu0 0.0
      %935 = vmatpush1.xpose.msra.mxu0 0.0
      %936 = vmatprep.subr.mxu0 0.0
      %937 = vmatpush1.xpose.msra.mxu0 0.0
      %938 = vmatprep.subr.mxu0 0.0
      %939 = vmatpush1.xpose.msra.mxu0 0.0
      %940 = vmatprep.subr.mxu0 0.0
      %941 = vmatpush1.xpose.msra.mxu0 0.0
      %942 = vmatprep.subr.mxu0 0.0
      %943 = vmatpush1.xpose.msra.mxu0 0.0
      %944 = vmatprep.subr.mxu0 0.0
      %945 = vmatpush1.xpose.msra.mxu0 0.0
      %946 = vmatprep.mubr.f32.mxu0 0.0
      %947 = vmatmul.mubr.f32.gmra.mrb[0].mxu0 %v877
      %v948 = vpop.f32.mrb[0].mxu0
      %v949 = vadd.f32 0.0, %v948
      %v950 = vpop.f32.mrb[0].mxu0
      %951 = vdwg.mxu0
      %v952 = vsel %vm426, %v425, 0
      %v955 = vsel %vm426, %v375, 0
      %957 = vmatprep.subr.mxu0 0.0
      %958 = vmatpush1.xpose.msra.mxu0 %v955
      %959 = vmatprep.subr.mxu0 0.0
      %960 = vmatpush1.xpose.msra.mxu0 0.0
      %961 = vmatprep.subr.mxu0 0.0
      %962 = vmatpush1.xpose.msra.mxu0 0.0
      %963 = vmatprep.subr.mxu0 0.0
      %964 = vmatpush1.xpose.msra.mxu0 0.0
      %965 = vmatprep.subr.mxu0 0.0
      %966 = vmatpush1.xpose.msra.mxu0 0.0
      %967 = vmatprep.subr.mxu0 0.0
      %968 = vmatpush1.xpose.msra.mxu0 0.0
      %969 = vmatprep.subr.mxu0 0.0
      %970 = vmatpush1.xpose.msra.mxu0 0.0
      %971 = vmatprep.subr.mxu0 0.0
      %972 = vmatpush1.xpose.msra.mxu0 0.0
      %973 = vmatprep.subr.mxu0 0.0
      %974 = vmatpush1.xpose.msra.mxu0 0.0
      %975 = vmatprep.subr.mxu0 0.0
      %976 = vmatpush1.xpose.msra.mxu0 0.0
      %977 = vmatprep.subr.mxu0 0.0
      %978 = vmatpush1.xpose.msra.mxu0 0.0
      %979 = vmatprep.subr.mxu0 0.0
      %980 = vmatpush1.xpose.msra.mxu0 0.0
      %981 = vmatprep.subr.mxu0 0.0
      %982 = vmatpush1.xpose.msra.mxu0 0.0
      %983 = vmatprep.subr.mxu0 0.0
      %984 = vmatpush1.xpose.msra.mxu0 0.0
      %985 = vmatprep.subr.mxu0 0.0
      %986 = vmatpush1.xpose.msra.mxu0 0.0
      %987 = vmatprep.subr.mxu0 0.0
      %988 = vmatpush1.xpose.msra.mxu0 0.0
      %989 = vmatprep.subr.mxu0 0.0
      %990 = vmatpush1.xpose.msra.mxu0 0.0
      %991 = vmatprep.subr.mxu0 0.0
      %992 = vmatpush1.xpose.msra.mxu0 0.0
      %993 = vmatprep.subr.mxu0 0.0
      %994 = vmatpush1.xpose.msra.mxu0 0.0
      %995 = vmatprep.subr.mxu0 0.0
      %996 = vmatpush1.xpose.msra.mxu0 0.0
      %997 = vmatprep.subr.mxu0 0.0
      %998 = vmatpush1.xpose.msra.mxu0 0.0
      %999 = vmatprep.subr.mxu0 0.0
      %1000 = vmatpush1.xpose.msra.mxu0 0.0
      %1001 = vmatprep.subr.mxu0 0.0
      %1002 = vmatpush1.xpose.msra.mxu0 0.0
      %1003 = vmatprep.subr.mxu0 0.0
      %1004 = vmatpush1.xpose.msra.mxu0 0.0
      %1005 = vmatprep.subr.mxu0 0.0
      %1006 = vmatpush1.xpose.msra.mxu0 0.0
      %1007 = vmatprep.subr.mxu0 0.0
      %1008 = vmatpush1.xpose.msra.mxu0 0.0
      %1009 = vmatprep.subr.mxu0 0.0
      %1010 = vmatpush1.xpose.msra.mxu0 0.0
      %1011 = vmatprep.subr.mxu0 0.0
      %1012 = vmatpush1.xpose.msra.mxu0 0.0
      %1013 = vmatprep.subr.mxu0 0.0
      %1014 = vmatpush1.xpose.msra.mxu0 0.0
      %1015 = vmatprep.subr.mxu0 0.0
      %1016 = vmatpush1.xpose.msra.mxu0 0.0
      %1017 = vmatprep.subr.mxu0 0.0
      %1018 = vmatpush1.xpose.msra.mxu0 0.0
      %1019 = vmatprep.subr.mxu0 0.0
      %1020 = vmatpush1.xpose.msra.mxu0 0.0
      %1021 = vmatprep.mubr.f32.mxu0 0.0
      %1022 = vmatmul.mubr.f32.gmra.mrb[0].mxu0 %v952
      %v1023 = vpop.f32.mrb[0].mxu0
      %v1024 = vadd.f32 0.0, %v1023
      %v1025 = vpop.f32.mrb[0].mxu0
      %1026 = vdwg.mxu0
      %vm1027 = vcmask 57344
      %v1028 = vsel %vm1027, %v499, -inf
      %1029 = vmax.xlane.f32.xlu0 %v1028
      %v1030 = vpop.xlane.xlu0 %1029
      %v1031 = vsel %vm1027, %v574, -inf
      %1032 = vmax.xlane.f32.xlu0 %v1031
      %v1033 = vpop.xlane.xlu0 %1032
      %v1034 = vsel %vm1027, %v649, -inf
      %1035 = vmax.xlane.f32.xlu0 %v1034
      %v1036 = vpop.xlane.xlu0 %1035
      %v1037 = vsel %vm1027, %v724, -inf
      %1038 = vmax.xlane.f32.xlu0 %v1037
      %v1039 = vpop.xlane.xlu0 %1038
      %v1040 = vsel %vm1027, %v799, -inf
      %1041 = vmax.xlane.f32.xlu0 %v1040
      %v1042 = vpop.xlane.xlu0 %1041
      %v1043 = vsel %vm1027, %v874, -inf
      %1044 = vmax.xlane.f32.xlu0 %v1043
      %v1045 = vpop.xlane.xlu0 %1044
      %v1046 = vsel %vm1027, %v949, -inf
      %1047 = vmax.xlane.f32.xlu0 %v1046
      %v1048 = vpop.xlane.xlu0 %1047
      %v1049 = vsel %vm1027, %v1024, -inf
      %1050 = vmax.xlane.f32.xlu0 %v1049
      %v1051 = vpop.xlane.xlu0 %1050
      %v1052 = vsub.f32 %v499, %v1030
      %v1053 = vsub.f32 %v574, %v1033
      %v1054 = vsub.f32 %v649, %v1036
      %v1055 = vsub.f32 %v724, %v1039
      %v1056 = vsub.f32 %v799, %v1042
      %v1057 = vsub.f32 %v874, %v1045
      %v1058 = vsub.f32 %v949, %v1048
      %v1059 = vsub.f32 %v1024, %v1051
      %v1060 = vmul.f32 %v1052, 1.442695
      %v1061 = vpow.pop %v1060
      %v1062 = vmul.f32 %v1053, 1.442695
      %v1063 = vpow.pop %v1062
      %v1064 = vmul.f32 %v1054, 1.442695
      %v1065 = vpow.pop %v1064
      %v1066 = vmul.f32 %v1055, 1.442695
      %v1067 = vpow.pop %v1066
      %v1068 = vmul.f32 %v1056, 1.442695
      %v1069 = vpow.pop %v1068
      %v1070 = vmul.f32 %v1057, 1.442695
      %v1071 = vpow.pop %v1070
      %v1072 = vmul.f32 %v1058, 1.442695
      %v1073 = vpow.pop %v1072
      %v1074 = vmul.f32 %v1059, 1.442695
      %v1075 = vpow.pop %v1074
      %v1076 = vsel %vm1027, %v1061, 0.0
      %1077 = vadd.xlane.f32.xlu0 %v1076
      %v1078 = vpop.xlane.xlu0 %1077
      %v1079 = vsel %vm1027, %v1063, 0.0
      %1080 = vadd.xlane.f32.xlu0 %v1079
      %v1081 = vpop.xlane.xlu0 %1080
      %v1082 = vsel %vm1027, %v1065, 0.0
      %1083 = vadd.xlane.f32.xlu0 %v1082
      %v1084 = vpop.xlane.xlu0 %1083
      %v1085 = vsel %vm1027, %v1067, 0.0
      %1086 = vadd.xlane.f32.xlu0 %v1085
      %v1087 = vpop.xlane.xlu0 %1086
      %v1088 = vsel %vm1027, %v1069, 0.0
      %1089 = vadd.xlane.f32.xlu0 %v1088
      %v1090 = vpop.xlane.xlu0 %1089
      %v1091 = vsel %vm1027, %v1071, 0.0
      %1092 = vadd.xlane.f32.xlu0 %v1091
      %v1093 = vpop.xlane.xlu0 %1092
      %v1094 = vsel %vm1027, %v1073, 0.0
      %1095 = vadd.xlane.f32.xlu0 %v1094
      %v1096 = vpop.xlane.xlu0 %1095
      %v1097 = vsel %vm1027, %v1075, 0.0
      %1098 = vadd.xlane.f32.xlu0 %v1097
      %v1099 = vpop.xlane.xlu0 %1098
      %v1100 = vrcp.pop %v1078
      %v1101 = vrcp.pop %v1081
      %v1102 = vrcp.pop %v1084
      %v1103 = vrcp.pop %v1087
      %v1104 = vrcp.pop %v1090
      %v1105 = vrcp.pop %v1093
      %v1106 = vrcp.pop %v1096
      %v1107 = vrcp.pop %v1099
      %v1108 = vmul.f32 %v1061, %v1100
      %v1109 = vmul.f32 %v1063, %v1101
      %v1110 = vmul.f32 %v1065, %v1102
      %v1111 = vmul.f32 %v1067, %v1103
      %v1112 = vmul.f32 %v1069, %v1104
      %v1113 = vmul.f32 %v1071, %v1105
      %v1114 = vmul.f32 %v1073, %v1106
      %v1115 = vmul.f32 %v1075, %v1107
      %vm1116 = vcmask 64512
      %v1118 = vsel %vm1116, %v1108, 0
      %1120 = vmatprep.subr.mxu0 0.0
      %1121 = vmatpush1.msra.mxu0 %v368
      %1122 = vmatprep.subr.mxu0 0.0
      %1123 = vmatpush1.msra.mxu0 0.0
      %1124 = vmatprep.subr.mxu0 0.0
      %1125 = vmatpush1.msra.mxu0 0.0
      %1126 = vmatprep.subr.mxu0 0.0
      %1127 = vmatpush1.msra.mxu0 0.0
      %1128 = vmatprep.subr.mxu0 0.0
      %1129 = vmatpush1.msra.mxu0 0.0
      %1130 = vmatprep.subr.mxu0 0.0
      %1131 = vmatpush1.msra.mxu0 0.0
      %1132 = vmatprep.subr.mxu0 0.0
      %1133 = vmatpush1.msra.mxu0 0.0
      %1134 = vmatprep.subr.mxu0 0.0
      %1135 = vmatpush1.msra.mxu0 0.0
      %1136 = vmatprep.subr.mxu0 0.0
      %1137 = vmatpush1.msra.mxu0 0.0
      %1138 = vmatprep.subr.mxu0 0.0
      %1139 = vmatpush1.msra.mxu0 0.0
      %1140 = vmatprep.subr.mxu0 0.0
      %1141 = vmatpush1.msra.mxu0 0.0
      %1142 = vmatprep.subr.mxu0 0.0
      %1143 = vmatpush1.msra.mxu0 0.0
      %1144 = vmatprep.subr.mxu0 0.0
      %1145 = vmatpush1.msra.mxu0 0.0
      %1146 = vmatprep.subr.mxu0 0.0
      %1147 = vmatpush1.msra.mxu0 0.0
      %1148 = vmatprep.subr.mxu0 0.0
      %1149 = vmatpush1.msra.mxu0 0.0
      %1150 = vmatprep.subr.mxu0 0.0
      %1151 = vmatpush1.msra.mxu0 0.0
      %1152 = vmatprep.subr.mxu0 0.0
      %1153 = vmatpush1.msra.mxu0 0.0
      %1154 = vmatprep.subr.mxu0 0.0
      %1155 = vmatpush1.msra.mxu0 0.0
      %1156 = vmatprep.subr.mxu0 0.0
      %1157 = vmatpush1.msra.mxu0 0.0
      %1158 = vmatprep.subr.mxu0 0.0
      %1159 = vmatpush1.msra.mxu0 0.0
      %1160 = vmatprep.subr.mxu0 0.0
      %1161 = vmatpush1.msra.mxu0 0.0
      %1162 = vmatprep.subr.mxu0 0.0
      %1163 = vmatpush1.msra.mxu0 0.0
      %1164 = vmatprep.subr.mxu0 0.0
      %1165 = vmatpush1.msra.mxu0 0.0
      %1166 = vmatprep.subr.mxu0 0.0
      %1167 = vmatpush1.msra.mxu0 0.0
      %1168 = vmatprep.subr.mxu0 0.0
      %1169 = vmatpush1.msra.mxu0 0.0
      %1170 = vmatprep.subr.mxu0 0.0
      %1171 = vmatpush1.msra.mxu0 0.0
      %1172 = vmatprep.subr.mxu0 0.0
      %1173 = vmatpush1.msra.mxu0 0.0
      %1174 = vmatprep.subr.mxu0 0.0
      %1175 = vmatpush1.msra.mxu0 0.0
      %1176 = vmatprep.subr.mxu0 0.0
      %1177 = vmatpush1.msra.mxu0 0.0
      %1178 = vmatprep.subr.mxu0 0.0
      %1179 = vmatpush1.msra.mxu0 0.0
      %1180 = vmatprep.subr.mxu0 0.0
      %1181 = vmatpush1.msra.mxu0 0.0
      %1182 = vmatprep.subr.mxu0 0.0
      %1183 = vmatpush1.msra.mxu0 0.0
      %1184 = vmatprep.mubr.f32.mxu0 0.0
      %1185 = vmatmul.mubr.f32.gmra.mrb[0].mxu0 %v1118
      %v1186 = vpop.f32.mrb[0].mxu0
      %v1187 = vadd.f32 0.0, %v1186
      %v1188 = vpop.f32.mrb[0].mxu0
      %1189 = vdwg.mxu0
      %v1191 = vsel %vm1116, %v1109, 0
      %1193 = vmatprep.subr.mxu0 0.0
      %1194 = vmatpush1.msra.mxu0 %v369
      %1195 = vmatprep.subr.mxu0 0.0
      %1196 = vmatpush1.msra.mxu0 0.0
      %1197 = vmatprep.subr.mxu0 0.0
      %1198 = vmatpush1.msra.mxu0 0.0
      %1199 = vmatprep.subr.mxu0 0.0
      %1200 = vmatpush1.msra.mxu0 0.0
      %1201 = vmatprep.subr.mxu0 0.0
      %1202 = vmatpush1.msra.mxu0 0.0
      %1203 = vmatprep.subr.mxu0 0.0
      %1204 = vmatpush1.msra.mxu0 0.0
      %1205 = vmatprep.subr.mxu0 0.0
      %1206 = vmatpush1.msra.mxu0 0.0
      %1207 = vmatprep.subr.mxu0 0.0
      %1208 = vmatpush1.msra.mxu0 0.0
      %1209 = vmatprep.subr.mxu0 0.0
      %1210 = vmatpush1.msra.mxu0 0.0
      %1211 = vmatprep.subr.mxu0 0.0
      %1212 = vmatpush1.msra.mxu0 0.0
      %1213 = vmatprep.subr.mxu0 0.0
      %1214 = vmatpush1.msra.mxu0 0.0
      %1215 = vmatprep.subr.mxu0 0.0
      %1216 = vmatpush1.msra.mxu0 0.0
      %1217 = vmatprep.subr.mxu0 0.0
      %1218 = vmatpush1.msra.mxu0 0.0
      %1219 = vmatprep.subr.mxu0 0.0
      %1220 = vmatpush1.msra.mxu0 0.0
      %1221 = vmatprep.subr.mxu0 0.0
      %1222 = vmatpush1.msra.mxu0 0.0
      %1223 = vmatprep.subr.mxu0 0.0
      %1224 = vmatpush1.msra.mxu0 0.0
      %1225 = vmatprep.subr.mxu0 0.0
      %1226 = vmatpush1.msra.mxu0 0.0
      %1227 = vmatprep.subr.mxu0 0.0
      %1228 = vmatpush1.msra.mxu0 0.0
      %1229 = vmatprep.subr.mxu0 0.0
      %1230 = vmatpush1.msra.mxu0 0.0
      %1231 = vmatprep.subr.mxu0 0.0
      %1232 = vmatpush1.msra.mxu0 0.0
      %1233 = vmatprep.subr.mxu0 0.0
      %1234 = vmatpush1.msra.mxu0 0.0
      %1235 = vmatprep.subr.mxu0 0.0
      %1236 = vmatpush1.msra.mxu0 0.0
      %1237 = vmatprep.subr.mxu0 0.0
      %1238 = vmatpush1.msra.mxu0 0.0
      %1239 = vmatprep.subr.mxu0 0.0
      %1240 = vmatpush1.msra.mxu0 0.0
      %1241 = vmatprep.subr.mxu0 0.0
      %1242 = vmatpush1.msra.mxu0 0.0
      %1243 = vmatprep.subr.mxu0 0.0
      %1244 = vmatpush1.msra.mxu0 0.0
      %1245 = vmatprep.subr.mxu0 0.0
      %1246 = vmatpush1.msra.mxu0 0.0
      %1247 = vmatprep.subr.mxu0 0.0
      %1248 = vmatpush1.msra.mxu0 0.0
      %1249 = vmatprep.subr.mxu0 0.0
      %1250 = vmatpush1.msra.mxu0 0.0
      %1251 = vmatprep.subr.mxu0 0.0
      %1252 = vmatpush1.msra.mxu0 0.0
      %1253 = vmatprep.subr.mxu0 0.0
      %1254 = vmatpush1.msra.mxu0 0.0
      %1255 = vmatprep.subr.mxu0 0.0
      %1256 = vmatpush1.msra.mxu0 0.0
      %1257 = vmatprep.mubr.f32.mxu0 0.0
      %1258 = vmatmul.mubr.f32.gmra.mrb[0].mxu0 %v1191
      %v1259 = vpop.f32.mrb[0].mxu0
      %v1260 = vadd.f32 0.0, %v1259
      %v1261 = vpop.f32.mrb[0].mxu0
      %1262 = vdwg.mxu0
      %v1264 = vsel %vm1116, %v1110, 0
      %1266 = vmatprep.subr.mxu0 0.0
      %1267 = vmatpush1.msra.mxu0 %v370
      %1268 = vmatprep.subr.mxu0 0.0
      %1269 = vmatpush1.msra.mxu0 0.0
      %1270 = vmatprep.subr.mxu0 0.0
      %1271 = vmatpush1.msra.mxu0 0.0
      %1272 = vmatprep.subr.mxu0 0.0
      %1273 = vmatpush1.msra.mxu0 0.0
      %1274 = vmatprep.subr.mxu0 0.0
      %1275 = vmatpush1.msra.mxu0 0.0
      %1276 = vmatprep.subr.mxu0 0.0
      %1277 = vmatpush1.msra.mxu0 0.0
      %1278 = vmatprep.subr.mxu0 0.0
      %1279 = vmatpush1.msra.mxu0 0.0
      %1280 = vmatprep.subr.mxu0 0.0
      %1281 = vmatpush1.msra.mxu0 0.0
      %1282 = vmatprep.subr.mxu0 0.0
      %1283 = vmatpush1.msra.mxu0 0.0
      %1284 = vmatprep.subr.mxu0 0.0
      %1285 = vmatpush1.msra.mxu0 0.0
      %1286 = vmatprep.subr.mxu0 0.0
      %1287 = vmatpush1.msra.mxu0 0.0
      %1288 = vmatprep.subr.mxu0 0.0
      %1289 = vmatpush1.msra.mxu0 0.0
      %1290 = vmatprep.subr.mxu0 0.0
      %1291 = vmatpush1.msra.mxu0 0.0
      %1292 = vmatprep.subr.mxu0 0.0
      %1293 = vmatpush1.msra.mxu0 0.0
      %1294 = vmatprep.subr.mxu0 0.0
      %1295 = vmatpush1.msra.mxu0 0.0
      %1296 = vmatprep.subr.mxu0 0.0
      %1297 = vmatpush1.msra.mxu0 0.0
      %1298 = vmatprep.subr.mxu0 0.0
      %1299 = vmatpush1.msra.mxu0 0.0
      %1300 = vmatprep.subr.mxu0 0.0
      %1301 = vmatpush1.msra.mxu0 0.0
      %1302 = vmatprep.subr.mxu0 0.0
      %1303 = vmatpush1.msra.mxu0 0.0
      %1304 = vmatprep.subr.mxu0 0.0
      %1305 = vmatpush1.msra.mxu0 0.0
      %1306 = vmatprep.subr.mxu0 0.0
      %1307 = vmatpush1.msra.mxu0 0.0
      %1308 = vmatprep.subr.mxu0 0.0
      %1309 = vmatpush1.msra.mxu0 0.0
      %1310 = vmatprep.subr.mxu0 0.0
      %1311 = vmatpush1.msra.mxu0 0.0
      %1312 = vmatprep.subr.mxu0 0.0
      %1313 = vmatpush1.msra.mxu0 0.0
      %1314 = vmatprep.subr.mxu0 0.0
      %1315 = vmatpush1.msra.mxu0 0.0
      %1316 = vmatprep.subr.mxu0 0.0
      %1317 = vmatpush1.msra.mxu0 0.0
      %1318 = vmatprep.subr.mxu0 0.0
      %1319 = vmatpush1.msra.mxu0 0.0
      %1320 = vmatprep.subr.mxu0 0.0
      %1321 = vmatpush1.msra.mxu0 0.0
      %1322 = vmatprep.subr.mxu0 0.0
      %1323 = vmatpush1.msra.mxu0 0.0
      %1324 = vmatprep.subr.mxu0 0.0
      %1325 = vmatpush1.msra.mxu0 0.0
      %1326 = vmatprep.subr.mxu0 0.0
      %1327 = vmatpush1.msra.mxu0 0.0
      %1328 = vmatprep.subr.mxu0 0.0
      %1329 = vmatpush1.msra.mxu0 0.0
      %1330 = vmatprep.mubr.f32.mxu0 0.0
      %1331 = vmatmul.mubr.f32.gmra.mrb[0].mxu0 %v1264
      %v1332 = vpop.f32.mrb[0].mxu0
      %v1333 = vadd.f32 0.0, %v1332
      %v1334 = vpop.f32.mrb[0].mxu0
      %1335 = vdwg.mxu0
      %v1337 = vsel %vm1116, %v1111, 0
      %1339 = vmatprep.subr.mxu0 0.0
      %1340 = vmatpush1.msra.mxu0 %v371
      %1341 = vmatprep.subr.mxu0 0.0
      %1342 = vmatpush1.msra.mxu0 0.0
      %1343 = vmatprep.subr.mxu0 0.0
      %1344 = vmatpush1.msra.mxu0 0.0
      %1345 = vmatprep.subr.mxu0 0.0
      %1346 = vmatpush1.msra.mxu0 0.0
      %1347 = vmatprep.subr.mxu0 0.0
      %1348 = vmatpush1.msra.mxu0 0.0
      %1349 = vmatprep.subr.mxu0 0.0
      %1350 = vmatpush1.msra.mxu0 0.0
      %1351 = vmatprep.subr.mxu0 0.0
      %1352 = vmatpush1.msra.mxu0 0.0
      %1353 = vmatprep.subr.mxu0 0.0
      %1354 = vmatpush1.msra.mxu0 0.0
      %1355 = vmatprep.subr.mxu0 0.0
      %1356 = vmatpush1.msra.mxu0 0.0
      %1357 = vmatprep.subr.mxu0 0.0
      %1358 = vmatpush1.msra.mxu0 0.0
      %1359 = vmatprep.subr.mxu0 0.0
      %1360 = vmatpush1.msra.mxu0 0.0
      %1361 = vmatprep.subr.mxu0 0.0
      %1362 = vmatpush1.msra.mxu0 0.0
      %1363 = vmatprep.subr.mxu0 0.0
      %1364 = vmatpush1.msra.mxu0 0.0
      %1365 = vmatprep.subr.mxu0 0.0
      %1366 = vmatpush1.msra.mxu0 0.0
      %1367 = vmatprep.subr.mxu0 0.0
      %1368 = vmatpush1.msra.mxu0 0.0
      %1369 = vmatprep.subr.mxu0 0.0
      %1370 = vmatpush1.msra.mxu0 0.0
      %1371 = vmatprep.subr.mxu0 0.0
      %1372 = vmatpush1.msra.mxu0 0.0
      %1373 = vmatprep.subr.mxu0 0.0
      %1374 = vmatpush1.msra.mxu0 0.0
      %1375 = vmatprep.subr.mxu0 0.0
      %1376 = vmatpush1.msra.mxu0 0.0
      %1377 = vmatprep.subr.mxu0 0.0
      %1378 = vmatpush1.msra.mxu0 0.0
      %1379 = vmatprep.subr.mxu0 0.0
      %1380 = vmatpush1.msra.mxu0 0.0
      %1381 = vmatprep.subr.mxu0 0.0
      %1382 = vmatpush1.msra.mxu0 0.0
      %1383 = vmatprep.subr.mxu0 0.0
      %1384 = vmatpush1.msra.mxu0 0.0
      %1385 = vmatprep.subr.mxu0 0.0
      %1386 = vmatpush1.msra.mxu0 0.0
      %1387 = vmatprep.subr.mxu0 0.0
      %1388 = vmatpush1.msra.mxu0 0.0
      %1389 = vmatprep.subr.mxu0 0.0
      %1390 = vmatpush1.msra.mxu0 0.0
      %1391 = vmatprep.subr.mxu0 0.0
      %1392 = vmatpush1.msra.mxu0 0.0
      %1393 = vmatprep.subr.mxu0 0.0
      %1394 = vmatpush1.msra.mxu0 0.0
      %1395 = vmatprep.subr.mxu0 0.0
      %1396 = vmatpush1.msra.mxu0 0.0
      %1397 = vmatprep.subr.mxu0 0.0
      %1398 = vmatpush1.msra.mxu0 0.0
      %1399 = vmatprep.subr.mxu0 0.0
      %1400 = vmatpush1.msra.mxu0 0.0
      %1401 = vmatprep.subr.mxu0 0.0
      %1402 = vmatpush1.msra.mxu0 0.0
      %1403 = vmatprep.mubr.f32.mxu0 0.0
      %1404 = vmatmul.mubr.f32.gmra.mrb[0].mxu0 %v1337
      %v1405 = vpop.f32.mrb[0].mxu0
      %v1406 = vadd.f32 0.0, %v1405
      %v1407 = vpop.f32.mrb[0].mxu0
      %1408 = vdwg.mxu0
      %v1410 = vsel %vm1116, %v1112, 0
      %1412 = vmatprep.subr.mxu0 0.0
      %1413 = vmatpush1.msra.mxu0 %v372
      %1414 = vmatprep.subr.mxu0 0.0
      %1415 = vmatpush1.msra.mxu0 0.0
      %1416 = vmatprep.subr.mxu0 0.0
      %1417 = vmatpush1.msra.mxu0 0.0
      %1418 = vmatprep.subr.mxu0 0.0
      %1419 = vmatpush1.msra.mxu0 0.0
      %1420 = vmatprep.subr.mxu0 0.0
      %1421 = vmatpush1.msra.mxu0 0.0
      %1422 = vmatprep.subr.mxu0 0.0
      %1423 = vmatpush1.msra.mxu0 0.0
      %1424 = vmatprep.subr.mxu0 0.0
      %1425 = vmatpush1.msra.mxu0 0.0
      %1426 = vmatprep.subr.mxu0 0.0
      %1427 = vmatpush1.msra.mxu0 0.0
      %1428 = vmatprep.subr.mxu0 0.0
      %1429 = vmatpush1.msra.mxu0 0.0
      %1430 = vmatprep.subr.mxu0 0.0
      %1431 = vmatpush1.msra.mxu0 0.0
      %1432 = vmatprep.subr.mxu0 0.0
      %1433 = vmatpush1.msra.mxu0 0.0
      %1434 = vmatprep.subr.mxu0 0.0
      %1435 = vmatpush1.msra.mxu0 0.0
      %1436 = vmatprep.subr.mxu0 0.0
      %1437 = vmatpush1.msra.mxu0 0.0
      %1438 = vmatprep.subr.mxu0 0.0
      %1439 = vmatpush1.msra.mxu0 0.0
      %1440 = vmatprep.subr.mxu0 0.0
      %1441 = vmatpush1.msra.mxu0 0.0
      %1442 = vmatprep.subr.mxu0 0.0
      %1443 = vmatpush1.msra.mxu0 0.0
      %1444 = vmatprep.subr.mxu0 0.0
      %1445 = vmatpush1.msra.mxu0 0.0
      %1446 = vmatprep.subr.mxu0 0.0
      %1447 = vmatpush1.msra.mxu0 0.0
      %1448 = vmatprep.subr.mxu0 0.0
      %1449 = vmatpush1.msra.mxu0 0.0
      %1450 = vmatprep.subr.mxu0 0.0
      %1451 = vmatpush1.msra.mxu0 0.0
      %1452 = vmatprep.subr.mxu0 0.0
      %1453 = vmatpush1.msra.mxu0 0.0
      %1454 = vmatprep.subr.mxu0 0.0
      %1455 = vmatpush1.msra.mxu0 0.0
      %1456 = vmatprep.subr.mxu0 0.0
      %1457 = vmatpush1.msra.mxu0 0.0
      %1458 = vmatprep.subr.mxu0 0.0
      %1459 = vmatpush1.msra.mxu0 0.0
      %1460 = vmatprep.subr.mxu0 0.0
      %1461 = vmatpush1.msra.mxu0 0.0
      %1462 = vmatprep.subr.mxu0 0.0
      %1463 = vmatpush1.msra.mxu0 0.0
      %1464 = vmatprep.subr.mxu0 0.0
      %1465 = vmatpush1.msra.mxu0 0.0
      %1466 = vmatprep.subr.mxu0 0.0
      %1467 = vmatpush1.msra.mxu0 0.0
      %1468 = vmatprep.subr.mxu0 0.0
      %1469 = vmatpush1.msra.mxu0 0.0
      %1470 = vmatprep.subr.mxu0 0.0
      %1471 = vmatpush1.msra.mxu0 0.0
      %1472 = vmatprep.subr.mxu0 0.0
      %1473 = vmatpush1.msra.mxu0 0.0
      %1474 = vmatprep.subr.mxu0 0.0
      %1475 = vmatpush1.msra.mxu0 0.0
      %1476 = vmatprep.mubr.f32.mxu0 0.0
      %1477 = vmatmul.mubr.f32.gmra.mrb[0].mxu0 %v1410
      %v1478 = vpop.f32.mrb[0].mxu0
      %v1479 = vadd.f32 0.0, %v1478
      %v1480 = vpop.f32.mrb[0].mxu0
      %1481 = vdwg.mxu0
      %v1483 = vsel %vm1116, %v1113, 0
      %1485 = vmatprep.subr.mxu0 0.0
      %1486 = vmatpush1.msra.mxu0 %v373
      %1487 = vmatprep.subr.mxu0 0.0
      %1488 = vmatpush1.msra.mxu0 0.0
      %1489 = vmatprep.subr.mxu0 0.0
      %1490 = vmatpush1.msra.mxu0 0.0
      %1491 = vmatprep.subr.mxu0 0.0
      %1492 = vmatpush1.msra.mxu0 0.0
      %1493 = vmatprep.subr.mxu0 0.0
      %1494 = vmatpush1.msra.mxu0 0.0
      %1495 = vmatprep.subr.mxu0 0.0
      %1496 = vmatpush1.msra.mxu0 0.0
      %1497 = vmatprep.subr.mxu0 0.0
      %1498 = vmatpush1.msra.mxu0 0.0
      %1499 = vmatprep.subr.mxu0 0.0
      %1500 = vmatpush1.msra.mxu0 0.0
      %1501 = vmatprep.subr.mxu0 0.0
      %1502 = vmatpush1.msra.mxu0 0.0
      %1503 = vmatprep.subr.mxu0 0.0
      %1504 = vmatpush1.msra.mxu0 0.0
      %1505 = vmatprep.subr.mxu0 0.0
      %1506 = vmatpush1.msra.mxu0 0.0
      %1507 = vmatprep.subr.mxu0 0.0
      %1508 = vmatpush1.msra.mxu0 0.0
      %1509 = vmatprep.subr.mxu0 0.0
      %1510 = vmatpush1.msra.mxu0 0.0
      %1511 = vmatprep.subr.mxu0 0.0
      %1512 = vmatpush1.msra.mxu0 0.0
      %1513 = vmatprep.subr.mxu0 0.0
      %1514 = vmatpush1.msra.mxu0 0.0
      %1515 = vmatprep.subr.mxu0 0.0
      %1516 = vmatpush1.msra.mxu0 0.0
      %1517 = vmatprep.subr.mxu0 0.0
      %1518 = vmatpush1.msra.mxu0 0.0
      %1519 = vmatprep.subr.mxu0 0.0
      %1520 = vmatpush1.msra.mxu0 0.0
      %1521 = vmatprep.subr.mxu0 0.0
      %1522 = vmatpush1.msra.mxu0 0.0
      %1523 = vmatprep.subr.mxu0 0.0
      %1524 = vmatpush1.msra.mxu0 0.0
      %1525 = vmatprep.subr.mxu0 0.0
      %1526 = vmatpush1.msra.mxu0 0.0
      %1527 = vmatprep.subr.mxu0 0.0
      %1528 = vmatpush1.msra.mxu0 0.0
      %1529 = vmatprep.subr.mxu0 0.0
      %1530 = vmatpush1.msra.mxu0 0.0
      %1531 = vmatprep.subr.mxu0 0.0
      %1532 = vmatpush1.msra.mxu0 0.0
      %1533 = vmatprep.subr.mxu0 0.0
      %1534 = vmatpush1.msra.mxu0 0.0
      %1535 = vmatprep.subr.mxu0 0.0
      %1536 = vmatpush1.msra.mxu0 0.0
      %1537 = vmatprep.subr.mxu0 0.0
      %1538 = vmatpush1.msra.mxu0 0.0
      %1539 = vmatprep.subr.mxu0 0.0
      %1540 = vmatpush1.msra.mxu0 0.0
      %1541 = vmatprep.subr.mxu0 0.0
      %1542 = vmatpush1.msra.mxu0 0.0
      %1543 = vmatprep.subr.mxu0 0.0
      %1544 = vmatpush1.msra.mxu0 0.0
      %1545 = vmatprep.subr.mxu0 0.0
      %1546 = vmatpush1.msra.mxu0 0.0
      %1547 = vmatprep.subr.mxu0 0.0
      %1548 = vmatpush1.msra.mxu0 0.0
      %1549 = vmatprep.mubr.f32.mxu0 0.0
      %1550 = vmatmul.mubr.f32.gmra.mrb[0].mxu0 %v1483
      %v1551 = vpop.f32.mrb[0].mxu0
      %v1552 = vadd.f32 0.0, %v1551
      %v1553 = vpop.f32.mrb[0].mxu0
      %1554 = vdwg.mxu0
      %v1556 = vsel %vm1116, %v1114, 0
      %1558 = vmatprep.subr.mxu0 0.0
      %1559 = vmatpush1.msra.mxu0 %v374
      %1560 = vmatprep.subr.mxu0 0.0
      %1561 = vmatpush1.msra.mxu0 0.0
      %1562 = vmatprep.subr.mxu0 0.0
      %1563 = vmatpush1.msra.mxu0 0.0
      %1564 = vmatprep.subr.mxu0 0.0
      %1565 = vmatpush1.msra.mxu0 0.0
      %1566 = vmatprep.subr.mxu0 0.0
      %1567 = vmatpush1.msra.mxu0 0.0
      %1568 = vmatprep.subr.mxu0 0.0
      %1569 = vmatpush1.msra.mxu0 0.0
      %1570 = vmatprep.subr.mxu0 0.0
      %1571 = vmatpush1.msra.mxu0 0.0
      %1572 = vmatprep.subr.mxu0 0.0
      %1573 = vmatpush1.msra.mxu0 0.0
      %1574 = vmatprep.subr.mxu0 0.0
      %1575 = vmatpush1.msra.mxu0 0.0
      %1576 = vmatprep.subr.mxu0 0.0
      %1577 = vmatpush1.msra.mxu0 0.0
      %1578 = vmatprep.subr.mxu0 0.0
      %1579 = vmatpush1.msra.mxu0 0.0
      %1580 = vmatprep.subr.mxu0 0.0
      %1581 = vmatpush1.msra.mxu0 0.0
      %1582 = vmatprep.subr.mxu0 0.0
      %1583 = vmatpush1.msra.mxu0 0.0
      %1584 = vmatprep.subr.mxu0 0.0
      %1585 = vmatpush1.msra.mxu0 0.0
      %1586 = vmatprep.subr.mxu0 0.0
      %1587 = vmatpush1.msra.mxu0 0.0
      %1588 = vmatprep.subr.mxu0 0.0
      %1589 = vmatpush1.msra.mxu0 0.0
      %1590 = vmatprep.subr.mxu0 0.0
      %1591 = vmatpush1.msra.mxu0 0.0
      %1592 = vmatprep.subr.mxu0 0.0
      %1593 = vmatpush1.msra.mxu0 0.0
      %1594 = vmatprep.subr.mxu0 0.0
      %1595 = vmatpush1.msra.mxu0 0.0
      %1596 = vmatprep.subr.mxu0 0.0
      %1597 = vmatpush1.msra.mxu0 0.0
      %1598 = vmatprep.subr.mxu0 0.0
      %1599 = vmatpush1.msra.mxu0 0.0
      %1600 = vmatprep.subr.mxu0 0.0
      %1601 = vmatpush1.msra.mxu0 0.0
      %1602 = vmatprep.subr.mxu0 0.0
      %1603 = vmatpush1.msra.mxu0 0.0
      %1604 = vmatprep.subr.mxu0 0.0
      %1605 = vmatpush1.msra.mxu0 0.0
      %1606 = vmatprep.subr.mxu0 0.0
      %1607 = vmatpush1.msra.mxu0 0.0
      %1608 = vmatprep.subr.mxu0 0.0
      %1609 = vmatpush1.msra.mxu0 0.0
      %1610 = vmatprep.subr.mxu0 0.0
      %1611 = vmatpush1.msra.mxu0 0.0
      %1612 = vmatprep.subr.mxu0 0.0
      %1613 = vmatpush1.msra.mxu0 0.0
      %1614 = vmatprep.subr.mxu0 0.0
      %1615 = vmatpush1.msra.mxu0 0.0
      %1616 = vmatprep.subr.mxu0 0.0
      %1617 = vmatpush1.msra.mxu0 0.0
      %1618 = vmatprep.subr.mxu0 0.0
      %1619 = vmatpush1.msra.mxu0 0.0
      %1620 = vmatprep.subr.mxu0 0.0
      %1621 = vmatpush1.msra.mxu0 0.0
      %1622 = vmatprep.mubr.f32.mxu0 0.0
      %1623 = vmatmul.mubr.f32.gmra.mrb[0].mxu0 %v1556
      %v1624 = vpop.f32.mrb[0].mxu0
      %v1625 = vadd.f32 0.0, %v1624
      %v1626 = vpop.f32.mrb[0].mxu0
      %1627 = vdwg.mxu0
      %v1629 = vsel %vm1116, %v1115, 0
      %1631 = vmatprep.subr.mxu0 0.0
      %1632 = vmatpush1.msra.mxu0 %v375
      %1633 = vmatprep.subr.mxu0 0.0
      %1634 = vmatpush1.msra.mxu0 0.0
      %1635 = vmatprep.subr.mxu0 0.0
      %1636 = vmatpush1.msra.mxu0 0.0
      %1637 = vmatprep.subr.mxu0 0.0
      %1638 = vmatpush1.msra.mxu0 0.0
      %1639 = vmatprep.subr.mxu0 0.0
      %1640 = vmatpush1.msra.mxu0 0.0
      %1641 = vmatprep.subr.mxu0 0.0
      %1642 = vmatpush1.msra.mxu0 0.0
      %1643 = vmatprep.subr.mxu0 0.0
      %1644 = vmatpush1.msra.mxu0 0.0
      %1645 = vmatprep.subr.mxu0 0.0
      %1646 = vmatpush1.msra.mxu0 0.0
      %1647 = vmatprep.subr.mxu0 0.0
      %1648 = vmatpush1.msra.mxu0 0.0
      %1649 = vmatprep.subr.mxu0 0.0
      %1650 = vmatpush1.msra.mxu0 0.0
      %1651 = vmatprep.subr.mxu0 0.0
      %1652 = vmatpush1.msra.mxu0 0.0
      %1653 = vmatprep.subr.mxu0 0.0
      %1654 = vmatpush1.msra.mxu0 0.0
      %1655 = vmatprep.subr.mxu0 0.0
      %1656 = vmatpush1.msra.mxu0 0.0
      %1657 = vmatprep.subr.mxu0 0.0
      %1658 = vmatpush1.msra.mxu0 0.0
      %1659 = vmatprep.subr.mxu0 0.0
      %1660 = vmatpush1.msra.mxu0 0.0
      %1661 = vmatprep.subr.mxu0 0.0
      %1662 = vmatpush1.msra.mxu0 0.0
      %1663 = vmatprep.subr.mxu0 0.0
      %1664 = vmatpush1.msra.mxu0 0.0
      %1665 = vmatprep.subr.mxu0 0.0
      %1666 = vmatpush1.msra.mxu0 0.0
      %1667 = vmatprep.subr.mxu0 0.0
      %1668 = vmatpush1.msra.mxu0 0.0
      %1669 = vmatprep.subr.mxu0 0.0
      %1670 = vmatpush1.msra.mxu0 0.0
      %1671 = vmatprep.subr.mxu0 0.0
      %1672 = vmatpush1.msra.mxu0 0.0
      %1673 = vmatprep.subr.mxu0 0.0
      %1674 = vmatpush1.msra.mxu0 0.0
      %1675 = vmatprep.subr.mxu0 0.0
      %1676 = vmatpush1.msra.mxu0 0.0
      %1677 = vmatprep.subr.mxu0 0.0
      %1678 = vmatpush1.msra.mxu0 0.0
      %1679 = vmatprep.subr.mxu0 0.0
      %1680 = vmatpush1.msra.mxu0 0.0
      %1681 = vmatprep.subr.mxu0 0.0
      %1682 = vmatpush1.msra.mxu0 0.0
      %1683 = vmatprep.subr.mxu0 0.0
      %1684 = vmatpush1.msra.mxu0 0.0
      %1685 = vmatprep.subr.mxu0 0.0
      %1686 = vmatpush1.msra.mxu0 0.0
      %1687 = vmatprep.subr.mxu0 0.0
      %1688 = vmatpush1.msra.mxu0 0.0
      %1689 = vmatprep.subr.mxu0 0.0
      %1690 = vmatpush1.msra.mxu0 0.0
      %1691 = vmatprep.subr.mxu0 0.0
      %1692 = vmatpush1.msra.mxu0 0.0
      %1693 = vmatprep.subr.mxu0 0.0
      %1694 = vmatpush1.msra.mxu0 0.0
      %1695 = vmatprep.mubr.f32.mxu0 0.0
      %1696 = vmatmul.mubr.f32.gmra.mrb[0].mxu0 %v1629
      %v1697 = vpop.f32.mrb[0].mxu0
      %v1698 = vadd.f32 0.0, %v1697
      %v1699 = vpop.f32.mrb[0].mxu0
      %1700 = vdwg.mxu0
      %v1709 = vrot.slane %v1260, 7
      %vm1710 = vcmask 1041409
      %v1711 = vsel %vm1710, %v1709, %v1187
      %v1712 = vrot.slane %v1333, 6
      %vm1713 = vcmask 1042434
      %v1714 = vsel %vm1713, %v1712, %v1711
      %v1715 = vrot.slane %v1406, 5
      %vm1716 = vcmask 1043459
      %v1717 = vsel %vm1716, %v1715, %v1714
      %v1718 = vrot.slane %v1479, 4
      %vm1719 = vcmask 1044484
      %v1720 = vsel %vm1719, %v1718, %v1717
      %v1721 = vrot.slane %v1552, 3
      %vm1722 = vcmask 1045509
      %v1723 = vsel %vm1722, %v1721, %v1720
      %v1724 = vrot.slane %v1625, 2
      %vm1725 = vcmask 1046534
      %v1726 = vsel %vm1725, %v1724, %v1723
      %v1727 = vrot.slane %v1698, 1
      %vm1728 = vcmask 1047559
      %v1729 = vsel %vm1728, %v1727, %v1726
      %1730 = vrot.lane.b32.xlu0 %v1729, 16
      %v1731 = vpop.permute.xlu0 %1730
      %1733 = vrot.lane.b32.xlu0 %v366, 48
      %v1734 = vpop.permute.xlu0 %1733
      %vm1736 = vcmask 130048
      %v1737 = vsel %vm1736, %v365, %v1731
      %vm1738 = vcmask 392192
      %v1739 = vsel %vm1738, %v1737, %v1734
      %v1740 = vld [vmem:[%s6] sm:$0xff]
      %v1741 = vld [vmem:[%s6 + $0x8] sm:$0xff]
      %v1742 = vld [vmem:[%s6 + $0x10] sm:$0xff]
      %v1743 = vld [vmem:[%s6 + $0x18] sm:$0xff]
      %v1744 = vld [vmem:[%s6 + $0x20] sm:$0xff]
      %v1745 = vld [vmem:[%s6 + $0x28] sm:$0xff]
      %v1746 = vld [vmem:[%s6 + $0x30] sm:$0xff]
      %v1747 = vld [vmem:[%s6 + $0x38] sm:$0xff]
      %v1748 = vld [vmem:[%s6 + $0x40] sm:$0xff]
      %v1749 = vld [vmem:[%s6 + $0x48] sm:$0xff]
      %v1750 = vld [vmem:[%s7] sm:$0x1]
      %v1752 = vlaneseq
      %v1753 = vshrl.u32 %v1752, 7
      %v1754 = vsub.s32 0, %v1753
      %v1755 = vrot.slane %v1750, %v1754
      %vm1757 = vcmask 654336
      %v1759 = vsel %vm1757, %v1739, 0
      %1761 = vmatprep.subr.mxu0 0.0
      %1762 = vmatpush1.msra.mxu0 %v1740
      %1763 = vmatprep.subr.mxu0 0.0
      %1764 = vmatpush1.msra.mxu0 %v1741
      %1765 = vmatprep.subr.mxu0 0.0
      %1766 = vmatpush1.msra.mxu0 %v1742
      %1767 = vmatprep.subr.mxu0 0.0
      %1768 = vmatpush1.msra.mxu0 %v1743
      %1769 = vmatprep.subr.mxu0 0.0
      %1770 = vmatpush1.msra.mxu0 %v1744
      %1771 = vmatprep.subr.mxu0 0.0
      %1772 = vmatpush1.msra.mxu0 %v1745
      %1773 = vmatprep.subr.mxu0 0.0
      %1774 = vmatpush1.msra.mxu0 %v1746
      %1775 = vmatprep.subr.mxu0 0.0
      %1776 = vmatpush1.msra.mxu0 %v1747
      %1777 = vmatprep.subr.mxu0 0.0
      %1778 = vmatpush1.msra.mxu0 %v1748
      %1779 = vmatprep.subr.mxu0 0.0
      %1780 = vmatpush1.msra.mxu0 %v1749
      %1781 = vmatprep.subr.mxu0 0.0
      %1782 = vmatpush1.msra.mxu0 0.0
      %1783 = vmatprep.subr.mxu0 0.0
      %1784 = vmatpush1.msra.mxu0 0.0
      %1785 = vmatprep.subr.mxu0 0.0
      %1786 = vmatpush1.msra.mxu0 0.0
      %1787 = vmatprep.subr.mxu0 0.0
      %1788 = vmatpush1.msra.mxu0 0.0
      %1789 = vmatprep.subr.mxu0 0.0
      %1790 = vmatpush1.msra.mxu0 0.0
      %1791 = vmatprep.subr.mxu0 0.0
      %1792 = vmatpush1.msra.mxu0 0.0
      %1793 = vmatprep.subr.mxu0 0.0
      %1794 = vmatpush1.msra.mxu0 0.0
      %1795 = vmatprep.subr.mxu0 0.0
      %1796 = vmatpush1.msra.mxu0 0.0
      %1797 = vmatprep.subr.mxu0 0.0
      %1798 = vmatpush1.msra.mxu0 0.0
      %1799 = vmatprep.subr.mxu0 0.0
      %1800 = vmatpush1.msra.mxu0 0.0
      %1801 = vmatprep.subr.mxu0 0.0
      %1802 = vmatpush1.msra.mxu0 0.0
      %1803 = vmatprep.subr.mxu0 0.0
      %1804 = vmatpush1.msra.mxu0 0.0
      %1805 = vmatprep.subr.mxu0 0.0
      %1806 = vmatpush1.msra.mxu0 0.0
      %1807 = vmatprep.subr.mxu0 0.0
      %1808 = vmatpush1.msra.mxu0 0.0
      %1809 = vmatprep.subr.mxu0 0.0
      %1810 = vmatpush1.msra.mxu0 0.0
      %1811 = vmatprep.subr.mxu0 0.0
      %1812 = vmatpush1.msra.mxu0 0.0
      %1813 = vmatprep.subr.mxu0 0.0
      %1814 = vmatpush1.msra.mxu0 0.0
      %1815 = vmatprep.subr.mxu0 0.0
      %1816 = vmatpush1.msra.mxu0 0.0
      %1817 = vmatprep.subr.mxu0 0.0
      %1818 = vmatpush1.msra.mxu0 0.0
      %1819 = vmatprep.subr.mxu0 0.0
      %1820 = vmatpush1.msra.mxu0 0.0
      %1821 = vmatprep.subr.mxu0 0.0
      %1822 = vmatpush1.msra.mxu0 0.0
      %1823 = vmatprep.subr.mxu0 0.0
      %1824 = vmatpush1.msra.mxu0 0.0
      %1825 = vmatprep.mubr.f32.mxu0 0.0
      %1826 = vmatmul.mubr.f32.gmra.mrb[0].mxu0 %v1759
      %v1827 = vpop.f32.mrb[0].mxu0
      %v1828 = vadd.f32 %v1755, %v1827
      %v1829 = vpop.f32.mrb[0].mxu0
      %1830 = vdwg.mxu0
      %v1831 = vxor.u32 %v1828, 2147483648
      %v1832 = vmul.f32 %v1831, 1.442695
      %v1833 = vpow.pop %v1832
      %v1834 = vadd.f32 %v1833, 1.0
      %v1835 = vrcp.pop %v1834
      %v1836 = vmul.f32 1.0, %v1835
      %v1837 = vtanh.pop %v1828
      %1839 = vrot.lane.b32.xlu0 %v367, 32
      %v1840 = vpop.permute.xlu0 %1839
      %v1842 = vmul.f32 %v1836, %v1840
      %1844 = vrot.lane.b32.xlu0 %v1837, 64
      %v1845 = vpop.permute.xlu0 %1844
      %v1847 = vmul.f32 %v1836, %v1845
      %1849 = vrot.lane.b32.xlu0 %v1847, 32
      %v1850 = vpop.permute.xlu0 %1849
      %v1852 = vadd.f32 %v1842, %v1850
      %v1853 = vtanh.pop %v1852
      %1855 = vrot.lane.b32.xlu0 %v1853, 64
      %v1856 = vpop.permute.xlu0 %1855
      %v1858 = vmul.f32 %v1836, %v1856
      %1860 = vrot.lane.b32.xlu0 %v1858, 32
      %v1861 = vpop.permute.xlu0 %1860
      %1863 = vrot.lane.b32.xlu0 %v1729, 32
      %v1864 = vpop.permute.xlu0 %1863
      %1867 = vrot.lane.b32.xlu0 %v365, 64
      %v1868 = vpop.permute.xlu0 %1867
      %v1870 = vsel %vm426, %v1861, %v1864
      %vm1871 = vcmask 523264
      %v1872 = vsel %vm1871, %v1870, %v1868
      %v1873 = vld [vmem:[%s8] sm:$0xff]
      %v1874 = vld [vmem:[%s8 + $0x8] sm:$0xff]
      %v1875 = vld [vmem:[%s8 + $0x10] sm:$0xff]
      %v1876 = vld [vmem:[%s8 + $0x18] sm:$0xff]
      %v1877 = vld [vmem:[%s8 + $0x20] sm:$0xff]
      %v1878 = vld [vmem:[%s8 + $0x28] sm:$0xff]
      %v1879 = vld [vmem:[%s8 + $0x30] sm:$0xff]
      %v1880 = vld [vmem:[%s8 + $0x38] sm:$0xff]
      %v1881 = vld [vmem:[%s8 + $0x40] sm:$0xff]
      %v1882 = vld [vmem:[%s8 + $0x48] sm:$0xff]
      %v1883 = vld [vmem:[%s9] sm:$0x1]
      %v1885 = vlaneseq
      %v1886 = vshrl.u32 %v1885, 7
      %v1887 = vsub.s32 0, %v1886
      %v1888 = vrot.slane %v1883, %v1887
      %v1891 = vsel %vm1757, %v1872, 0
      %1893 = vmatprep.subr.mxu0 0.0
      %1894 = vmatpush1.msra.mxu0 %v1873
      %1895 = vmatprep.subr.mxu0 0.0
      %1896 = vmatpush1.msra.mxu0 %v1874
      %1897 = vmatprep.subr.mxu0 0.0
      %1898 = vmatpush1.msra.mxu0 %v1875
      %1899 = vmatprep.subr.mxu0 0.0
      %1900 = vmatpush1.msra.mxu0 %v1876
      %1901 = vmatprep.subr.mxu0 0.0
      %1902 = vmatpush1.msra.mxu0 %v1877
      %1903 = vmatprep.subr.mxu0 0.0
      %1904 = vmatpush1.msra.mxu0 %v1878
      %1905 = vmatprep.subr.mxu0 0.0
      %1906 = vmatpush1.msra.mxu0 %v1879
      %1907 = vmatprep.subr.mxu0 0.0
      %1908 = vmatpush1.msra.mxu0 %v1880
      %1909 = vmatprep.subr.mxu0 0.0
      %1910 = vmatpush1.msra.mxu0 %v1881
      %1911 = vmatprep.subr.mxu0 0.0
      %1912 = vmatpush1.msra.mxu0 %v1882
      %1913 = vmatprep.subr.mxu0 0.0
      %1914 = vmatpush1.msra.mxu0 0.0
      %1915 = vmatprep.subr.mxu0 0.0
      %1916 = vmatpush1.msra.mxu0 0.0
      %1917 = vmatprep.subr.mxu0 0.0
      %1918 = vmatpush1.msra.mxu0 0.0
      %1919 = vmatprep.subr.mxu0 0.0
      %1920 = vmatpush1.msra.mxu0 0.0
      %1921 = vmatprep.subr.mxu0 0.0
      %1922 = vmatpush1.msra.mxu0 0.0
      %1923 = vmatprep.subr.mxu0 0.0
      %1924 = vmatpush1.msra.mxu0 0.0
      %1925 = vmatprep.subr.mxu0 0.0
      %1926 = vmatpush1.msra.mxu0 0.0
      %1927 = vmatprep.subr.mxu0 0.0
      %1928 = vmatpush1.msra.mxu0 0.0
      %1929 = vmatprep.subr.mxu0 0.0
      %1930 = vmatpush1.msra.mxu0 0.0
      %1931 = vmatprep.subr.mxu0 0.0
      %1932 = vmatpush1.msra.mxu0 0.0
      %1933 = vmatprep.subr.mxu0 0.0
      %1934 = vmatpush1.msra.mxu0 0.0
      %1935 = vmatprep.subr.mxu0 0.0
      %1936 = vmatpush1.msra.mxu0 0.0
      %1937 = vmatprep.subr.mxu0 0.0
      %1938 = vmatpush1.msra.mxu0 0.0
      %1939 = vmatprep.subr.mxu0 0.0
      %1940 = vmatpush1.msra.mxu0 0.0
      %1941 = vmatprep.subr.mxu0 0.0
      %1942 = vmatpush1.msra.mxu0 0.0
      %1943 = vmatprep.subr.mxu0 0.0
      %1944 = vmatpush1.msra.mxu0 0.0
      %1945 = vmatprep.subr.mxu0 0.0
      %1946 = vmatpush1.msra.mxu0 0.0
      %1947 = vmatprep.subr.mxu0 0.0
      %1948 = vmatpush1.msra.mxu0 0.0
      %1949 = vmatprep.subr.mxu0 0.0
      %1950 = vmatpush1.msra.mxu0 0.0
      %1951 = vmatprep.subr.mxu0 0.0
      %1952 = vmatpush1.msra.mxu0 0.0
      %1953 = vmatprep.subr.mxu0 0.0
      %1954 = vmatpush1.msra.mxu0 0.0
      %1955 = vmatprep.subr.mxu0 0.0
      %1956 = vmatpush1.msra.mxu0 0.0
      %1957 = vmatprep.mubr.f32.mxu0 0.0
      %1958 = vmatmul.mubr.f32.gmra.mrb[0].mxu0 %v1891
      %v1959 = vpop.f32.mrb[0].mxu0
      %v1960 = vadd.f32 %v1888, %v1959
      %v1961 = vpop.f32.mrb[0].mxu0
      %1962 = vdwg.mxu0
      %1963 = vst [vmem:[%s334] sm:$0xff] %v1960
      %1964 = vst.msk [vmem:[#allocation2] sm:$0xff] %vm426, %v1861
      %1966 = vrot.lane.b32.xlu0 %v1852, 96
      %v1967 = vpop.permute.xlu0 %1966
      %1969 = vst.msk [vmem:[#allocation3] sm:$0xff] %vm426, %v1967
      %s1970 = sadd.s32 %s27, 1
      %p1971 = scmp.lt.s32.totalorder %s1970, 7
      // Predicated region
      $region65: #{seq2seq_forward.3} parent=55 // pred_check
        %p1972 = pneg %p1971
      $region66: #{seq2seq_forward.3} parent=55 // pred_check_branch
        %1974 = sbr.rel (%p1972) target = $region68
      $region67: #{seq2seq_forward.3} parent=55 // pred_region
        %v1975 = vlaneseq
        %v1976 = vand.u32 %v1975, 127
        %vm1977 = vcmp.lt.s32.totalorder %v1976, 20
        %v1978 = vsel %vm1977, %v1960, -1e+30
        %1979 = vmax.xlane.f32.xlu0 %v1978
        %v1980 = vpop.xlane.xlu0 %1979
        %vm1981 = vcmp.eq.f32.partialorder %v1978, %v1980
        %v1982 = vsel %vm1981, %v1976, 128
        %v1983 = vand.u32 %v1982, 65535
        %v1984 = vshra.s32 %v1982, 16
        %v1985 = vcvt.s32.f32 %v1983
        %v1986 = vcvt.s32.f32 %v1984
        %1987 = vmin.xlane.f32.xlu0 %v1986
        %v1988 = vpop.xlane.xlu0 %1987
        %vm1989 = vcmp.eq.f32.partialorder %v1986, %v1988
        %v1990 = vsel %vm1989, %v1985, inf
        %1991 = vmin.xlane.f32.xlu0 %v1990
        %v1992 = vpop.xlane.xlu0 %1991
        %v1993 = vcvt.f32.s32 %v1992
        %v1994 = vcvt.f32.s32 %v1988
        %v1995 = vshll.u32 %v1994, 16
        %v1996 = vadd.s32 %v1995, %v1993
        %vm1997 = vcmp.eq.s32.totalorder %v1976, %v1996
        %v1998 = vsel %vm1997, 1, 0
        %v1999 = vcvt.s32.f32 %v1998
        %v2000 = vld [vmem:[%s5] sm:$0xff]
        %v2001 = vld [vmem:[%s5 + $0x8] sm:$0xff]
        %v2002 = vld [vmem:[%s5 + $0x10] sm:$0xff]
        %v2003 = vld [vmem:[%s5 + $0x18] sm:$0xff]
        %v2004 = vld [vmem:[%s5 + $0x20] sm:$0xff]
        %v2005 = vld [vmem:[%s5 + $0x28] sm:$0xff]
        %v2006 = vld [vmem:[%s5 + $0x30] sm:$0xff]
        %v2007 = vld [vmem:[%s5 + $0x38] sm:$0xff]
        %v2008 = vld [vmem:[%s5 + $0x40] sm:$0xff]
        %v2009 = vld [vmem:[%s5 + $0x48] sm:$0xff]
        %v2010 = vld [vmem:[%s5 + $0x50] sm:$0xff]
        %v2011 = vld [vmem:[%s5 + $0x58] sm:$0xff]
        %v2012 = vld [vmem:[%s5 + $0x60] sm:$0xff]
        %v2013 = vld [vmem:[%s5 + $0x68] sm:$0xff]
        %v2014 = vld [vmem:[%s5 + $0x70] sm:$0xff]
        %v2015 = vld [vmem:[%s5 + $0x78] sm:$0xff]
        %2016 = vmatprep.subr.mxu0 0.0
        %2017 = vmatpush1.msra.mxu0 %v2000
        %2018 = vmatprep.subr.mxu0 0.0
        %2019 = vmatpush1.msra.mxu0 %v2001
        %2020 = vmatprep.subr.mxu0 0.0
        %2021 = vmatpush1.msra.mxu0 %v2002
        %2022 = vmatprep.subr.mxu0 0.0
        %2023 = vmatpush1.msra.mxu0 %v2003
        %2024 = vmatprep.subr.mxu0 0.0
        %2025 = vmatpush1.msra.mxu0 %v2004
        %2026 = vmatprep.subr.mxu0 0.0
        %2027 = vmatpush1.msra.mxu0 %v2005
        %2028 = vmatprep.subr.mxu0 0.0
        %2029 = vmatpush1.msra.mxu0 %v2006
        %2030 = vmatprep.subr.mxu0 0.0
        %2031 = vmatpush1.msra.mxu0 %v2007
        %2032 = vmatprep.subr.mxu0 0.0
        %2033 = vmatpush1.msra.mxu0 %v2008
        %2034 = vmatprep.subr.mxu0 0.0
        %2035 = vmatpush1.msra.mxu0 %v2009
        %2036 = vmatprep.subr.mxu0 0.0
        %2037 = vmatpush1.msra.mxu0 %v2010
        %2038 = vmatprep.subr.mxu0 0.0
        %2039 = vmatpush1.msra.mxu0 %v2011
        %2040 = vmatprep.subr.mxu0 0.0
        %2041 = vmatpush1.msra.mxu0 %v2012
        %2042 = vmatprep.subr.mxu0 0.0
        %2043 = vmatpush1.msra.mxu0 %v2013
        %2044 = vmatprep.subr.mxu0 0.0
        %2045 = vmatpush1.msra.mxu0 %v2014
        %2046 = vmatprep.subr.mxu0 0.0
        %2047 = vmatpush1.msra.mxu0 %v2015
        %2048 = vmatprep.subr.mxu0 0.0
        %2049 = vmatpush1.msra.mxu0 0.0
        %2050 = vmatprep.subr.mxu0 0.0
        %2051 = vmatpush1.msra.mxu0 0.0
        %2052 = vmatprep.subr.mxu0 0.0
        %2053 = vmatpush1.msra.mxu0 0.0
        %2054 = vmatprep.subr.mxu0 0.0
        %2055 = vmatpush1.msra.mxu0 0.0
        %2056 = vmatprep.subr.mxu0 0.0
        %2057 = vmatpush1.msra.mxu0 0.0
        %2058 = vmatprep.subr.mxu0 0.0
        %2059 = vmatpush1.msra.mxu0 0.0
        %2060 = vmatprep.subr.mxu0 0.0
        %2061 = vmatpush1.msra.mxu0 0.0
        %2062 = vmatprep.subr.mxu0 0.0
        %2063 = vmatpush1.msra.mxu0 0.0
        %2064 = vmatprep.subr.mxu0 0.0
        %2065 = vmatpush1.msra.mxu0 0.0
        %2066 = vmatprep.subr.mxu0 0.0
        %2067 = vmatpush1.msra.mxu0 0.0
        %2068 = vmatprep.subr.mxu0 0.0
        %2069 = vmatpush1.msra.mxu0 0.0
        %2070 = vmatprep.subr.mxu0 0.0
        %2071 = vmatpush1.msra.mxu0 0.0
        %2072 = vmatprep.subr.mxu0 0.0
        %2073 = vmatpush1.msra.mxu0 0.0
        %2074 = vmatprep.subr.mxu0 0.0
        %2075 = vmatpush1.msra.mxu0 0.0
        %2076 = vmatprep.subr.mxu0 0.0
        %2077 = vmatpush1.msra.mxu0 0.0
        %2078 = vmatprep.subr.mxu0 0.0
        %2079 = vmatpush1.msra.mxu0 0.0
        %2080 = vmatprep.mubr.f32.mxu0 0.0
        %2081 = vmatmul.mubr.f32.gmra.mrb[0].mxu0 %v1999
        %v2082 = vpop.f32.mrb[0].mxu0
        %v2083 = vadd.f32 0.0, %v2082
        %v2084 = vpop.f32.mrb[0].mxu0
        %2085 = vdwg.mxu0
        %2086 = vst.msk [vmem:[#allocation4] sm:$0xff] %vm1736, %v2083
      $region68: #{seq2seq_forward.3} parent=55 // pred_fallthru
        _
      %p2087 = scmp.lt.s32.totalorder %s27, 6
      %s2088 = scalar_select %p2087, %s27, 6
      %s2089 = smul.addr %s2088, 8
      %s2090 = scalar_lea.vmem %s10, %s2089
      // Predicated region
      $region69: #{seq2seq_forward.3} parent=55 // pred_check
        %p2091 = pneg %p239
      $region70: #{seq2seq_forward.3} parent=55 // pred_check_branch
        %2093 = sbr.rel (%p2091) target = $region72
      $region71: #{seq2seq_forward.3} parent=55 // pred_region
        _
      $region72: #{seq2seq_forward.3} parent=55 // pred_fallthru
        _
    $region56: #{seq2seq_forward.3} parent=5 // pred_fallthru
      _
    %p2094 = scmp.le.s32.totalorder 2, %s22
    // Predicated region
    $region73: #{seq2seq_forward.3} parent=5 // pred_check
      %p2095 = pneg %p2094
    $region74: #{seq2seq_forward.3} parent=5 // pred_check_branch
      %2097 = sbr.rel (%p2095) target = $region76
    $region75: #{seq2seq_forward.3} parent=5 // pred_region
      %s2098 = ssub.s32 %s22, 2
      // Predicated region
      $region77: #{seq2seq_forward.3} parent=75 // pred_check
        %p2099 = pneg %p245
      $region78: #{seq2seq_forward.3} parent=75 // pred_check_branch
        %2101 = sbr.rel (%p2099) target = $region80
      $region79: #{seq2seq_forward.3} parent=75 // pred_region
        %p2102 = scmp.lt.s32.totalorder %s28, 6
        %s2103 = scalar_select %p2102, %s28, 6
        %s2104 = smul.addr %s2103, 8
        %s2105 = scalar_lea.vmem %s10, %s2104
      $region80: #{seq2seq_forward.3} parent=75 // pred_fallthru
        _
    $region76: #{seq2seq_forward.3} parent=5 // pred_fallthru
      _
  $region6: #{seq2seq_forward.3} parent=0 // loop_footer
    %s26 = sadd.s32 1, %s22
  $region7: #{seq2seq_forward.3} parent=0 // loop_footer_branch
    %21 = sbr.rel target = $region3
  $region8: #{seq2seq_forward.3} parent=0 // loop_exit
    _

</llo_original>
